<compile_context>
chip_gen: v6e
topology: v6e:2x2x1
jax: 0.10.0
libtpu: 0.0.40
codegen_flags: <defaults>
</compile_context>

<pallas_src>
import functools

import jax
import jax.numpy as jnp
from jax.experimental import pallas as pl
from jax.experimental.pallas import tpu as pltpu


EMBED_DIM = 512
OUT_DIM = 30
OUT_PAD = 128   # lane-dense output store; wrapper slices [:, :OUT_DIM]
LANE = 128
SUBLANE = 8


def _round_up(n, m):
    return ((n + m - 1) // m) * m


# TODO(synk): the pretrained InceptionResnetV1('vggface2') tower cannot be
# reproduced in-script; it is replaced by a frozen global-average-pool over the
# spatial dims followed by a linear embedding C -> 512 (same (B, 512) output
# contract), fused into the same kernel as the trainable MLP head.
def fused_kernel(x_ref, we_ref, be_ref, w1_ref, b1_ref, w2_ref, b2_ref,
                 w3_ref, b3_ref, o_ref, pooled_ref, *, n_chan, inv_hw):
    j = pl.program_id(1)

    # ---- streaming spatial sum: only one (tb, C, hw_chunk) slab is resident
    # per grid step; per-channel sums accumulate in a small VMEM scratch. ----
    @pl.when(j == 0)
    def _():
        pooled_ref[...] = jnp.zeros_like(pooled_ref)

    part = jnp.sum(x_ref[...], axis=-1)                       # (tb, C) lane reduce
    pooled_ref[:, 0:n_chan] = pooled_ref[:, 0:n_chan] + part

    # ---- on the last spatial chunk: embedding + trainable head on the MXU ----
    @pl.when(j == pl.num_programs(1) - 1)
    def _():
        pooled = pooled_ref[...] * inv_hw                     # (tb, C_pad); pad lanes 0
        # Frozen-backbone surrogate embedding: C -> 512 as one (K padded) matmul.
        feat = jnp.dot(pooled, we_ref[...],
                       preferred_element_type=jnp.float32) + be_ref[...]
        # Head: Linear(512,512) -> ReLU -> Linear(512,512) -> Linear(512,30 pad 128),
        # bf16 operands with f32 accumulation.
        h = jnp.dot(feat.astype(jnp.bfloat16), w1_ref[...],
                    preferred_element_type=jnp.float32) + b1_ref[...]
        h = jnp.maximum(h, 0.0)
        h = jnp.dot(h.astype(jnp.bfloat16), w2_ref[...],
                    preferred_element_type=jnp.float32) + b2_ref[...]
        o_ref[...] = jnp.dot(h.astype(jnp.bfloat16), w3_ref[...],
                             preferred_element_type=jnp.float32) + b3_ref[...]


def model_forward(x, params):
    B, C, H, W = x.shape
    hw = H * W
    f32, bf16 = jnp.float32, jnp.bfloat16

    # ---- batch tiling: 256-tall tiles for large batches (v6e/v7x MXU), else
    # the smallest sublane-aligned tile covering the batch (<=128). ----
    tb = 256 if B >= 256 else min(128, _round_up(B, SUBLANE))
    b_pad = _round_up(B, tb)

    # ---- spatial chunking: keep each x slab ~<=2 MiB of VMEM (counting the
    # sublane-padded channel dim), so the double-buffered input stays far under
    # the scoped VMEM limits on v5e/v6e/v7x regardless of image size. ----
    sub_c = _round_up(C, SUBLANE)
    max_block_bytes = 2 * 1024 * 1024
    hw_chunk = max(LANE, (max_block_bytes // (tb * sub_c * 4)) // LANE * LANE)
    hw_pad = _round_up(hw, LANE)
    hw_chunk = min(hw_chunk, hw_pad)
    n_hw = pl.cdiv(hw_pad, hw_chunk)
    hw_pad = n_hw * hw_chunk
    inv_hw = 1.0 / float(hw)          # true spatial size; zero padding keeps the sum exact

    x3 = x.reshape(B, C, hw).astype(f32)
    x3 = jnp.pad(x3, ((0, b_pad - B), (0, 0), (0, hw_pad - hw)))

    # ---- weights: resident in VMEM via constant index_map (DMA'd once). ----
    C_pad = _round_up(C, SUBLANE)     # pad embedding K dim for a clean MXU pass
    we = jnp.pad(params["w_embed"].astype(f32), ((0, C_pad - C), (0, 0)))
    be = params["b_embed"].reshape(1, EMBED_DIM).astype(f32)
    w1 = params["w1"].astype(bf16)
    b1 = params["b1"].reshape(1, EMBED_DIM).astype(f32)
    w2 = params["w2"].astype(bf16)
    b2 = params["b2"].reshape(1, EMBED_DIM).astype(f32)
    w3p = jnp.pad(params["w3"], ((0, 0), (0, OUT_PAD - OUT_DIM))).astype(bf16)
    b3p = jnp.pad(params["b3"], (0, OUT_PAD - OUT_DIM)).reshape(1, OUT_PAD).astype(f32)

    kernel = functools.partial(fused_kernel, n_chan=C, inv_hw=inv_hw)
    const = lambda i, j: (0, 0)

    # Advisory cost estimate for XLA's scheduler around the custom call.
    flops = int(b_pad * C * hw_pad
                + 2 * b_pad * EMBED_DIM * (C_pad + EMBED_DIM + EMBED_DIM + OUT_PAD))
    bytes_accessed = int(
        b_pad * C * hw_pad * 4 + b_pad * OUT_PAD * 4
        + (we.size + be.size + b1.size + b2.size + b3p.size) * 4
        + (w1.size + w2.size + w3p.size) * 2)

    out = pl.pallas_call(
        kernel,
        out_shape=jax.ShapeDtypeStruct((b_pad, OUT_PAD), f32),
        grid=(b_pad // tb, n_hw),
        in_specs=[
            pl.BlockSpec((tb, C, hw_chunk), lambda i, j: (i, 0, j)),  # x slab (streamed)
            pl.BlockSpec((C_pad, EMBED_DIM), const),                  # w_embed (f32)
            pl.BlockSpec((1, EMBED_DIM), const),                      # b_embed
            pl.BlockSpec((EMBED_DIM, EMBED_DIM), const),              # w1 (bf16)
            pl.BlockSpec((1, EMBED_DIM), const),                      # b1
            pl.BlockSpec((EMBED_DIM, EMBED_DIM), const),              # w2 (bf16)
            pl.BlockSpec((1, EMBED_DIM), const),                      # b2
            pl.BlockSpec((EMBED_DIM, OUT_PAD), const),                # w3 (bf16, padded)
            pl.BlockSpec((1, OUT_PAD), const),                        # b3 (padded)
        ],
        out_specs=pl.BlockSpec((tb, OUT_PAD), lambda i, j: (i, 0)),
        scratch_shapes=[pltpu.VMEM((tb, C_pad), f32)],                # pooled accumulator
        compiler_params=pltpu.CompilerParams(
            dimension_semantics=("parallel", "arbitrary"),
            vmem_limit_bytes=32 * 1024 * 1024),
        cost_estimate=pl.CostEstimate(flops=flops, transcendentals=0,
                                      bytes_accessed=bytes_accessed),
    )(x3, we, be, w1, b1, w2, b2, w3p, b3p)

    return out[:B, :OUT_DIM]


def init_params(key, in_channels=3, embed_dim=EMBED_DIM, out_dim=OUT_DIM):
    ks = jax.random.split(key, 7)

    def lin(k, fan_in, fan_out):
        scale = 1.0 / jnp.sqrt(jnp.float32(fan_in))
        return jax.random.normal(k, (fan_in, fan_out), jnp.float32) * scale

    return {
        "w_embed": lin(ks[0], in_channels, embed_dim),
        "b_embed": jnp.zeros((embed_dim,), jnp.float32),
        "w1": lin(ks[1], embed_dim, embed_dim),
        "b1": jax.random.normal(ks[2], (embed_dim,), jnp.float32) * 0.01,
        "w2": lin(ks[3], embed_dim, embed_dim),
        "b2": jax.random.normal(ks[4], (embed_dim,), jnp.float32) * 0.01,
        "w3": lin(ks[5], embed_dim, out_dim),
        "b3": jax.random.normal(ks[6], (out_dim,), jnp.float32) * 0.01,
    }


if __name__ == "__main__":
    key = jax.random.PRNGKey(0)
    k_x, k_p = jax.random.split(key)

    # Small NCHW image batch consistent with the module's image input.
    x = jax.random.normal(k_x, (2, 3, 16, 16), jnp.float32)
    params = init_params(k_p)

    out = jax.jit(model_forward)(x, params)
    out = jax.block_until_ready(out)

    # Pure-JAX (f32) reference of the same math; the head runs in bf16 inside
    # the kernel, so the tolerance is loosened accordingly.
    pooled = jnp.mean(x.reshape(2, 3, -1), axis=-1)
    feat_ref = pooled @ params["w_embed"] + params["b_embed"]
    h = jnp.maximum(feat_ref @ params["w1"] + params["b1"], 0.0)
    h = h @ params["w2"] + params["b2"]
    ref = h @ params["w3"] + params["b3"]

    assert out.shape == (2, 30)
    assert jnp.allclose(out, ref, atol=2e-2, rtol=2e-2)

    print("KERNEL_OK")
</pallas_src>

<mosaic_0001>
module attributes {stable_mosaic.version = 11 : i64} {
  func.func @fused_kernel(%arg0: i32, %arg1: i32, %arg2: memref<8x3x256xf32, #tpu.memory_space<vmem>>, %arg3: memref<8x512xf32, #tpu.memory_space<vmem>>, %arg4: memref<1x512xf32, #tpu.memory_space<vmem>>, %arg5: memref<512x512xbf16, #tpu.memory_space<vmem>>, %arg6: memref<1x512xf32, #tpu.memory_space<vmem>>, %arg7: memref<512x512xbf16, #tpu.memory_space<vmem>>, %arg8: memref<1x512xf32, #tpu.memory_space<vmem>>, %arg9: memref<512x128xbf16, #tpu.memory_space<vmem>>, %arg10: memref<1x128xf32, #tpu.memory_space<vmem>>, %arg11: memref<8x128xf32, #tpu.memory_space<vmem>>, %arg12: memref<8x8xf32, #tpu.memory_space<vmem>>) attributes {dimension_semantics = [#tpu.dimension_semantics<parallel>, #tpu.dimension_semantics<arbitrary>], iteration_bounds = array<i64: 1, 1>, scalar_prefetch = 0 : i64, scratch_operands = 1 : i64, tpu.core_type = #tpu.core_type<tc>, window_params = [{transform_indices = @transform_0, window_bounds = array<i64: 8, 3, 256>}, {pipeline_mode = #tpu.pipeline_mode<synchronous>, transform_indices = @transform_1, window_bounds = array<i64: 8, 512>}, {pipeline_mode = #tpu.pipeline_mode<synchronous>, transform_indices = @transform_2, window_bounds = array<i64: 1, 512>}, {pipeline_mode = #tpu.pipeline_mode<synchronous>, transform_indices = @transform_3, window_bounds = array<i64: 512, 512>}, {pipeline_mode = #tpu.pipeline_mode<synchronous>, transform_indices = @transform_4, window_bounds = array<i64: 1, 512>}, {pipeline_mode = #tpu.pipeline_mode<synchronous>, transform_indices = @transform_5, window_bounds = array<i64: 512, 512>}, {pipeline_mode = #tpu.pipeline_mode<synchronous>, transform_indices = @transform_6, window_bounds = array<i64: 1, 512>}, {pipeline_mode = #tpu.pipeline_mode<synchronous>, transform_indices = @transform_7, window_bounds = array<i64: 512, 128>}, {pipeline_mode = #tpu.pipeline_mode<synchronous>, transform_indices = @transform_8, window_bounds = array<i64: 1, 128>}, {transform_indices = @transform_9, window_bounds = array<i64: 8, 128>}]} {
    %c0_i32 = arith.constant 0 : i32
    %0 = arith.cmpi eq, %arg1, %c0_i32 : i32
    %1 = arith.extui %0 : i1 to i32
    %c0_i32_0 = arith.constant 0 : i32
    %2 = arith.cmpi ne, %1, %c0_i32_0 : i32
    scf.if %2 {
      %cst_9 = arith.constant 0.000000e+00 : f32
      %11 = vector.broadcast %cst_9 : f32 to vector<8x8xf32>
      %c0_10 = arith.constant 0 : index
      %c0_11 = arith.constant 0 : index
      %12 = vector.load %arg12[%c0_10, %c0_11] : memref<8x8xf32, #tpu.memory_space<vmem>>, vector<8x8xf32>
      tpu.vector_store %arg12[%c0_10, %c0_11], %11 {strides = array<i32>} : memref<8x8xf32, #tpu.memory_space<vmem>>, vector<8x8xf32>,
    } else {
    }
    %c0 = arith.constant 0 : index
    %c0_1 = arith.constant 0 : index
    %c0_2 = arith.constant 0 : index
    %3 = vector.load %arg2[%c0, %c0_1, %c0_2] : memref<8x3x256xf32, #tpu.memory_space<vmem>>, vector<8x3x256xf32>
    %cst = arith.constant dense<0.000000e+00> : vector<8x3xf32>
    %4 = vector.multi_reduction <add>, %3, %cst [2] : vector<8x3x256xf32> to vector<8x3xf32>
    %c0_3 = arith.constant 0 : index
    %c0_4 = arith.constant 0 : index
    %5 = vector.load %arg12[%c0_3, %c0_4] : memref<8x8xf32, #tpu.memory_space<vmem>>, vector<8x3xf32>
    %6 = arith.addf %5, %4 : vector<8x3xf32>
    %c0_5 = arith.constant 0 : index
    %c0_6 = arith.constant 0 : index
    %7 = vector.load %arg12[%c0_5, %c0_6] : memref<8x8xf32, #tpu.memory_space<vmem>>, vector<8x3xf32>
    tpu.vector_store %arg12[%c0_5, %c0_6], %6 {strides = array<i32>} : memref<8x8xf32, #tpu.memory_space<vmem>>, vector<8x3xf32>,
    %c0_i32_7 = arith.constant 0 : i32
    %8 = arith.cmpi eq, %arg1, %c0_i32_7 : i32
    %9 = arith.extui %8 : i1 to i32
    %c0_i32_8 = arith.constant 0 : i32
    %10 = arith.cmpi ne, %9, %c0_i32_8 : i32
    scf.if %10 {
      %c0_9 = arith.constant 0 : index
      %c0_10 = arith.constant 0 : index
      %11 = vector.load %arg12[%c0_9, %c0_10] : memref<8x8xf32, #tpu.memory_space<vmem>>, vector<8x8xf32>
      %cst_11 = arith.constant 3.906250e-03 : f32
      %12 = vector.broadcast %cst_11 : f32 to vector<8x8xf32>
      %13 = arith.mulf %11, %12 : vector<8x8xf32>
      %c0_12 = arith.constant 0 : index
      %c0_13 = arith.constant 0 : index
      %14 = vector.load %arg3[%c0_12, %c0_13] : memref<8x512xf32, #tpu.memory_space<vmem>>, vector<8x512xf32>
      %cst_14 = arith.constant dense<0.000000e+00> : vector<8x512xf32>
      %15 = tpu.matmul %13, %14, %cst_14 {dimension_numbers = #tpu.dot_dimension_numbers<[1], [0], [0], [1], [0, 0, 1, 1], [], []>} : vector<8x8xf32>, vector<8x512xf32>, vector<8x512xf32> -> vector<8x512xf32>
      %c0_15 = arith.constant 0 : index
      %c0_16 = arith.constant 0 : index
      %16 = vector.load %arg4[%c0_15, %c0_16] : memref<1x512xf32, #tpu.memory_space<vmem>>, vector<1x512xf32>
      %17 = vector.broadcast %16 : vector<1x512xf32> to vector<8x512xf32>
      %18 = arith.addf %15, %17 : vector<8x512xf32>
      %19 = arith.truncf %18 : vector<8x512xf32> to vector<8x512xbf16>
      %c0_17 = arith.constant 0 : index
      %c0_18 = arith.constant 0 : index
      %20 = vector.load %arg5[%c0_17, %c0_18] : memref<512x512xbf16, #tpu.memory_space<vmem>>, vector<512x512xbf16>
      %cst_19 = arith.constant dense<0.000000e+00> : vector<8x512xf32>
      %21 = tpu.matmul %19, %20, %cst_19 {dimension_numbers = #tpu.dot_dimension_numbers<[1], [0], [0], [1], [0, 0, 1, 1], [], []>} : vector<8x512xbf16>, vector<512x512xbf16>, vector<8x512xf32> -> vector<8x512xf32>
      %c0_20 = arith.constant 0 : index
      %c0_21 = arith.constant 0 : index
      %22 = vector.load %arg6[%c0_20, %c0_21] : memref<1x512xf32, #tpu.memory_space<vmem>>, vector<1x512xf32>
      %23 = vector.broadcast %22 : vector<1x512xf32> to vector<8x512xf32>
      %24 = arith.addf %21, %23 : vector<8x512xf32>
      %cst_22 = arith.constant 0.000000e+00 : f32
      %25 = vector.broadcast %cst_22 : f32 to vector<8x512xf32>
      %26 = arith.maximumf %24, %25 : vector<8x512xf32>
      %27 = arith.truncf %26 : vector<8x512xf32> to vector<8x512xbf16>
      %c0_23 = arith.constant 0 : index
      %c0_24 = arith.constant 0 : index
      %28 = vector.load %arg7[%c0_23, %c0_24] : memref<512x512xbf16, #tpu.memory_space<vmem>>, vector<512x512xbf16>
      %cst_25 = arith.constant dense<0.000000e+00> : vector<8x512xf32>
      %29 = tpu.matmul %27, %28, %cst_25 {dimension_numbers = #tpu.dot_dimension_numbers<[1], [0], [0], [1], [0, 0, 1, 1], [], []>} : vector<8x512xbf16>, vector<512x512xbf16>, vector<8x512xf32> -> vector<8x512xf32>
      %c0_26 = arith.constant 0 : index
      %c0_27 = arith.constant 0 : index
      %30 = vector.load %arg8[%c0_26, %c0_27] : memref<1x512xf32, #tpu.memory_space<vmem>>, vector<1x512xf32>
      %31 = vector.broadcast %30 : vector<1x512xf32> to vector<8x512xf32>
      %32 = arith.addf %29, %31 : vector<8x512xf32>
      %33 = arith.truncf %32 : vector<8x512xf32> to vector<8x512xbf16>
      %c0_28 = arith.constant 0 : index
      %c0_29 = arith.constant 0 : index
      %34 = vector.load %arg9[%c0_28, %c0_29] : memref<512x128xbf16, #tpu.memory_space<vmem>>, vector<512x128xbf16>
      %cst_30 = arith.constant dense<0.000000e+00> : vector<8x128xf32>
      %35 = tpu.matmul %33, %34, %cst_30 {dimension_numbers = #tpu.dot_dimension_numbers<[1], [0], [0], [1], [0, 0, 1, 1], [], []>} : vector<8x512xbf16>, vector<512x128xbf16>, vector<8x128xf32> -> vector<8x128xf32>
      %c0_31 = arith.constant 0 : index
      %c0_32 = arith.constant 0 : index
      %36 = vector.load %arg10[%c0_31, %c0_32] : memref<1x128xf32, #tpu.memory_space<vmem>>, vector<1x128xf32>
      %37 = vector.broadcast %36 : vector<1x128xf32> to vector<8x128xf32>
      %38 = arith.addf %35, %37 : vector<8x128xf32>
      %c0_33 = arith.constant 0 : index
      %c0_34 = arith.constant 0 : index
      %39 = vector.load %arg11[%c0_33, %c0_34] : memref<8x128xf32, #tpu.memory_space<vmem>>, vector<8x128xf32>
      tpu.vector_store %arg11[%c0_33, %c0_34], %38 {strides = array<i32>} : memref<8x128xf32, #tpu.memory_space<vmem>>, vector<8x128xf32>,
    } else {
    }
    return
  }
  func.func @transform_0(%arg0: i32, %arg1: i32) -> (i32, i32, i32) {
    %c0_i32 = arith.constant 0 : i32
    %c0_i32_0 = arith.constant 0 : i32
    return %arg0, %c0_i32, %arg1 : i32, i32, i32
  }
  func.func @transform_1(%arg0: i32, %arg1: i32) -> (i32, i32) {
    %c0_i32 = arith.constant 0 : i32
    %c0_i32_0 = arith.constant 0 : i32
    %c0_i32_1 = arith.constant 0 : i32
    return %c0_i32, %c0_i32_0 : i32, i32
  }
  func.func @transform_2(%arg0: i32, %arg1: i32) -> (i32, i32) {
    %c0_i32 = arith.constant 0 : i32
    %c0_i32_0 = arith.constant 0 : i32
    %c0_i32_1 = arith.constant 0 : i32
    return %c0_i32, %c0_i32_0 : i32, i32
  }
  func.func @transform_3(%arg0: i32, %arg1: i32) -> (i32, i32) {
    %c0_i32 = arith.constant 0 : i32
    %c0_i32_0 = arith.constant 0 : i32
    %c0_i32_1 = arith.constant 0 : i32
    return %c0_i32, %c0_i32_0 : i32, i32
  }
  func.func @transform_4(%arg0: i32, %arg1: i32) -> (i32, i32) {
    %c0_i32 = arith.constant 0 : i32
    %c0_i32_0 = arith.constant 0 : i32
    %c0_i32_1 = arith.constant 0 : i32
    return %c0_i32, %c0_i32_0 : i32, i32
  }
  func.func @transform_5(%arg0: i32, %arg1: i32) -> (i32, i32) {
    %c0_i32 = arith.constant 0 : i32
    %c0_i32_0 = arith.constant 0 : i32
    %c0_i32_1 = arith.constant 0 : i32
    return %c0_i32, %c0_i32_0 : i32, i32
  }
  func.func @transform_6(%arg0: i32, %arg1: i32) -> (i32, i32) {
    %c0_i32 = arith.constant 0 : i32
    %c0_i32_0 = arith.constant 0 : i32
    %c0_i32_1 = arith.constant 0 : i32
    return %c0_i32, %c0_i32_0 : i32, i32
  }
  func.func @transform_7(%arg0: i32, %arg1: i32) -> (i32, i32) {
    %c0_i32 = arith.constant 0 : i32
    %c0_i32_0 = arith.constant 0 : i32
    %c0_i32_1 = arith.constant 0 : i32
    return %c0_i32, %c0_i32_0 : i32, i32
  }
  func.func @transform_8(%arg0: i32, %arg1: i32) -> (i32, i32) {
    %c0_i32 = arith.constant 0 : i32
    %c0_i32_0 = arith.constant 0 : i32
    %c0_i32_1 = arith.constant 0 : i32
    return %c0_i32, %c0_i32_0 : i32, i32
  }
  func.func @transform_9(%arg0: i32, %arg1: i32) -> (i32, i32) {
    %c0_i32 = arith.constant 0 : i32
    %c0_i32_0 = arith.constant 0 : i32
    return %arg0, %c0_i32 : i32, i32
  }
}

</mosaic_0001>

<llo_original>
// kernel: model_forward.1
$region0: #{model_forward.1}
  #allocation0 [shape = 'u32[]', space=smem, size = 0x4, offset = 0x4, fixed_abs, tag = 'smem constant byte address 0x4 - core index']
  #allocation1 [shape = 'u32[144,128]{1,0:T(1,128)}', space=vmem, size = 0x12000, scoped, tag = 'internal scratch']
  #allocation2 [shape = 'f32[8,8]{1,0:T(8,128)}', space=vmem, size = 0x1000, scoped, tag = 'scratch operand']
  %s0 = inlined_call_operand.vmem [shape: f32[8,3,256], index: 0, kind: input, shape index: {}]
  %s1 = inlined_call_operand.vmem [shape: f32[8,512], index: 1, kind: input, shape index: {}]
  %s2 = inlined_call_operand.vmem [shape: f32[1,512], index: 2, kind: input, shape index: {}]
  %s3 = inlined_call_operand.vmem [shape: bf16[512,512], index: 3, kind: input, shape index: {}]
  %s4 = inlined_call_operand.vmem [shape: f32[1,512], index: 4, kind: input, shape index: {}]
  %s5 = inlined_call_operand.vmem [shape: bf16[512,512], index: 5, kind: input, shape index: {}]
  %s6 = inlined_call_operand.vmem [shape: f32[1,512], index: 6, kind: input, shape index: {}]
  %s7 = inlined_call_operand.vmem [shape: bf16[512,128], index: 7, kind: input, shape index: {}]
  %s8 = inlined_call_operand.vmem [shape: f32[1,128], index: 8, kind: input, shape index: {}]
  %s9 = inlined_call_operand.vmem [shape: f32[8,128], index: 9, kind: output, shape index: {}]
  %s10 = sld [smem:[#allocation0]]
  $region54: #{model_forward.1} parent=0
    _
  %s12 = ssub.s32 1, %s10
  %s13 = scalar_select 0, %s12, %s10
  // Predicated region
  $region2: #{model_forward.1} parent=0 // pred_check
    _
  $region3: #{model_forward.1} parent=0 // pred_check_branch
    %15 = sbr.rel (0) target = $region5
  $region4: #{model_forward.1} parent=0 // pred_region
    _
  $region5: #{model_forward.1} parent=0 // pred_fallthru
    _
  // Predicated region
  $region6: #{model_forward.1} parent=0 // pred_check
    _
  $region7: #{model_forward.1} parent=0 // pred_check_branch
    %17 = sbr.rel (0) target = $region9
  $region8: #{model_forward.1} parent=0 // pred_region
    _
  $region9: #{model_forward.1} parent=0 // pred_fallthru
    _
  // Predicated region
  $region10: #{model_forward.1} parent=0 // pred_check
    _
  $region11: #{model_forward.1} parent=0 // pred_check_branch
    %19 = sbr.rel (0) target = $region13
  $region12: #{model_forward.1} parent=0 // pred_region
    _
  $region13: #{model_forward.1} parent=0 // pred_fallthru
    _
  // Predicated region
  $region14: #{model_forward.1} parent=0 // pred_check
    _
  $region15: #{model_forward.1} parent=0 // pred_check_branch
    %21 = sbr.rel (0) target = $region17
  $region16: #{model_forward.1} parent=0 // pred_region
    _
  $region17: #{model_forward.1} parent=0 // pred_fallthru
    _
  // Predicated region
  $region18: #{model_forward.1} parent=0 // pred_check
    _
  $region19: #{model_forward.1} parent=0 // pred_check_branch
    %23 = sbr.rel (0) target = $region21
  $region20: #{model_forward.1} parent=0 // pred_region
    _
  $region21: #{model_forward.1} parent=0 // pred_fallthru
    _
  // Predicated region
  $region22: #{model_forward.1} parent=0 // pred_check
    _
  $region23: #{model_forward.1} parent=0 // pred_check_branch
    %25 = sbr.rel (0) target = $region25
  $region24: #{model_forward.1} parent=0 // pred_region
    _
  $region25: #{model_forward.1} parent=0 // pred_fallthru
    _
  // Predicated region
  $region26: #{model_forward.1} parent=0 // pred_check
    _
  $region27: #{model_forward.1} parent=0 // pred_check_branch
    %27 = sbr.rel (0) target = $region29
  $region28: #{model_forward.1} parent=0 // pred_region
    _
  $region29: #{model_forward.1} parent=0 // pred_fallthru
    _
  // Predicated region
  $region30: #{model_forward.1} parent=0 // pred_check
    _
  $region31: #{model_forward.1} parent=0 // pred_check_branch
    %29 = sbr.rel (0) target = $region33
  $region32: #{model_forward.1} parent=0 // pred_region
    _
  $region33: #{model_forward.1} parent=0 // pred_fallthru
    _
  // Predicated region
  $region34: #{model_forward.1} parent=0 // pred_check
    _
  $region35: #{model_forward.1} parent=0 // pred_check_branch
    %31 = sbr.rel (0) target = $region37
  $region36: #{model_forward.1} parent=0 // pred_region
    _
  $region37: #{model_forward.1} parent=0 // pred_fallthru
    _
  %p33 = scmp.eq.s32.totalorder 0, 0
  // Predicated region
  $region38: #{model_forward.1} parent=0 // pred_check
    %p34 = pneg %p33
  $region39: #{model_forward.1} parent=0 // pred_check_branch
    %36 = sbr.rel (%p34) target = $region41
  $region40: #{model_forward.1} parent=0 // pred_region
    %vm37 = vcmask 64512
    %38 = vst.msk [vmem:[#allocation2] sm:$0xff] %vm37, 0.0
  $region41: #{model_forward.1} parent=0 // pred_fallthru
    _
  %v39 = vld [vmem:[%s0] sm:$0x77]
  %v40 = vld [vmem:[%s0 + $0x8] sm:$0x77]
  %v41 = vld [vmem:[%s0 + $0x10] sm:$0x77]
  %v42 = vld [vmem:[%s0 + $0x18] sm:$0x77]
  %v43 = vld [vmem:[%s0 + $0x20] sm:$0x77]
  %v44 = vld [vmem:[%s0 + $0x28] sm:$0x77]
  %v45 = vld [vmem:[%s0 + $0x30] sm:$0x77]
  %v46 = vld [vmem:[%s0 + $0x38] sm:$0x77]
  %v55 = vcombine.high %v39, %v39
  %v56 = vcombine.high %v40, %v40
  %v57 = vcombine.high %v41, %v41
  %v58 = vcombine.high %v42, %v42
  %v59 = vcombine.high %v43, %v43
  %v60 = vcombine.high %v44, %v44
  %v61 = vcombine.high %v45, %v45
  %v62 = vcombine.high %v46, %v46
  %vm71 = vcmask 1042432
  %v72 = vsel %vm71, %v39, 0.0
  %v73 = vsel %vm71, %v55, 0.0
  %v74 = vadd.f32 %v72, %v73
  %75 = vadd.xlane.f32.xlu0 %v74
  %v76 = vpop.xlane.xlu0 %75
  %v77 = vsel %vm71, %v40, 0.0
  %v78 = vsel %vm71, %v56, 0.0
  %v79 = vadd.f32 %v77, %v78
  %80 = vadd.xlane.f32.xlu0 %v79
  %v81 = vpop.xlane.xlu0 %80
  %v82 = vsel %vm71, %v41, 0.0
  %v83 = vsel %vm71, %v57, 0.0
  %v84 = vadd.f32 %v82, %v83
  %85 = vadd.xlane.f32.xlu0 %v84
  %v86 = vpop.xlane.xlu0 %85
  %v87 = vsel %vm71, %v42, 0.0
  %v88 = vsel %vm71, %v58, 0.0
  %v89 = vadd.f32 %v87, %v88
  %90 = vadd.xlane.f32.xlu0 %v89
  %v91 = vpop.xlane.xlu0 %90
  %v92 = vsel %vm71, %v43, 0.0
  %v93 = vsel %vm71, %v59, 0.0
  %v94 = vadd.f32 %v92, %v93
  %95 = vadd.xlane.f32.xlu0 %v94
  %v96 = vpop.xlane.xlu0 %95
  %v97 = vsel %vm71, %v44, 0.0
  %v98 = vsel %vm71, %v60, 0.0
  %v99 = vadd.f32 %v97, %v98
  %100 = vadd.xlane.f32.xlu0 %v99
  %v101 = vpop.xlane.xlu0 %100
  %v102 = vsel %vm71, %v45, 0.0
  %v103 = vsel %vm71, %v61, 0.0
  %v104 = vadd.f32 %v102, %v103
  %105 = vadd.xlane.f32.xlu0 %v104
  %v106 = vpop.xlane.xlu0 %105
  %v107 = vsel %vm71, %v46, 0.0
  %v108 = vsel %vm71, %v62, 0.0
  %v109 = vadd.f32 %v107, %v108
  %110 = vadd.xlane.f32.xlu0 %v109
  %v111 = vpop.xlane.xlu0 %110
  %v112 = vld [vmem:[#allocation2] sm:$0xff]
  %v121 = vlaneseq
  %v122 = vand.u32 %v121, 127
  %v123 = vlaneseq
  %v124 = vshrl.u32 %v123, 7
  %v125 = vsub.s32 %v122, %v124
  %v126 = vrot.slane %v76, %v125
  %v127 = vlaneseq
  %v128 = vshrl.u32 %v127, 7
  %v129 = vsub.s32 %v122, %v128
  %v130 = vrot.slane %v81, %v129
  %v131 = vlaneseq
  %v132 = vshrl.u32 %v131, 7
  %v133 = vsub.s32 %v122, %v132
  %v134 = vrot.slane %v86, %v133
  %v135 = vlaneseq
  %v136 = vshrl.u32 %v135, 7
  %v137 = vsub.s32 %v122, %v136
  %v138 = vrot.slane %v91, %v137
  %v139 = vlaneseq
  %v140 = vshrl.u32 %v139, 7
  %v141 = vsub.s32 %v122, %v140
  %v142 = vrot.slane %v96, %v141
  %v143 = vlaneseq
  %v144 = vshrl.u32 %v143, 7
  %v145 = vsub.s32 %v122, %v144
  %v146 = vrot.slane %v101, %v145
  %v147 = vlaneseq
  %v148 = vshrl.u32 %v147, 7
  %v149 = vsub.s32 %v122, %v148
  %v150 = vrot.slane %v106, %v149
  %v151 = vlaneseq
  %v152 = vshrl.u32 %v151, 7
  %v153 = vsub.s32 %v122, %v152
  %v154 = vrot.slane %v111, %v153
  %vm155 = vcmask 1041409
  %v156 = vsel %vm155, %v130, %v126
  %vm157 = vcmask 1042434
  %v158 = vsel %vm157, %v134, %v156
  %vm159 = vcmask 1043459
  %v160 = vsel %vm159, %v138, %v158
  %vm161 = vcmask 1044484
  %v162 = vsel %vm161, %v142, %v160
  %vm163 = vcmask 1045509
  %v164 = vsel %vm163, %v146, %v162
  %vm165 = vcmask 1046534
  %v166 = vsel %vm165, %v150, %v164
  %vm167 = vcmask 1047559
  %v168 = vsel %vm167, %v154, %v166
  %v170 = vadd.f32 %v112, %v168
  %vm171 = vcmask 23552
  %172 = vst.msk [vmem:[#allocation2] sm:$0xff] %vm171, %v170
  // Predicated region
  $region42: #{model_forward.1} parent=0 // pred_check
    %p173 = pneg %p33
  $region43: #{model_forward.1} parent=0 // pred_check_branch
    %175 = sbr.rel (%p173) target = $region45
  $region44: #{model_forward.1} parent=0 // pred_region
    %v176 = vld [vmem:[#allocation2] sm:$0xff]
    %v177 = vmul.f32 %v176, 0.00390625
    %v178 = vld [vmem:[%s1] sm:$0xff]
    %v179 = vld [vmem:[%s1 + $0x8] sm:$0xff]
    %v180 = vld [vmem:[%s1 + $0x10] sm:$0xff]
    %v181 = vld [vmem:[%s1 + $0x18] sm:$0xff]
    %v182 = vld [vmem:[%s2] sm:$0xf]
    %v184 = vlaneseq
    %v185 = vshrl.u32 %v184, 7
    %v186 = vsub.s32 0, %v185
    %v187 = vrot.slane %v182, %v186
    %v188 = vlaneseq
    %v189 = vshrl.u32 %v188, 7
    %v190 = vsub.s32 1, %v189
    %v191 = vrot.slane %v182, %v190
    %v192 = vlaneseq
    %v193 = vshrl.u32 %v192, 7
    %v194 = vsub.s32 2, %v193
    %v195 = vrot.slane %v182, %v194
    %v196 = vlaneseq
    %v197 = vshrl.u32 %v196, 7
    %v198 = vsub.s32 3, %v197
    %v199 = vrot.slane %v182, %v198
    %vm204 = vcmask 64512
    %v206 = vsel %vm204, %v177, 0
    %208 = vmatprep.subr.mxu0 0.0
    %209 = vmatpush1.msra.mxu0 0.0
    %210 = vmatprep.subr.mxu0 0.0
    %211 = vmatpush1.msra.mxu0 0.0
    %212 = vmatprep.subr.mxu0 0.0
    %213 = vmatpush1.msra.mxu0 0.0
    %214 = vmatprep.subr.mxu0 0.0
    %215 = vmatpush1.msra.mxu0 0.0
    %216 = vmatprep.subr.mxu0 0.0
    %217 = vmatpush1.msra.mxu0 0.0
    %218 = vmatprep.subr.mxu0 0.0
    %219 = vmatpush1.msra.mxu0 0.0
    %220 = vmatprep.subr.mxu0 0.0
    %221 = vmatpush1.msra.mxu0 0.0
    %222 = vmatprep.subr.mxu0 0.0
    %223 = vmatpush1.msra.mxu0 0.0
    %224 = vmatprep.subr.mxu0 0.0
    %225 = vmatpush1.msra.mxu0 0.0
    %226 = vmatprep.subr.mxu0 0.0
    %227 = vmatpush1.msra.mxu0 0.0
    %228 = vmatprep.subr.mxu0 0.0
    %229 = vmatpush1.msra.mxu0 0.0
    %230 = vmatprep.subr.mxu0 0.0
    %231 = vmatpush1.msra.mxu0 0.0
    %232 = vmatprep.subr.mxu0 0.0
    %233 = vmatpush1.msra.mxu0 0.0
    %234 = vmatprep.subr.mxu0 0.0
    %235 = vmatpush1.msra.mxu0 0.0
    %236 = vmatprep.subr.mxu0 0.0
    %237 = vmatpush1.msra.mxu0 0.0
    %238 = vmatprep.subr.mxu0 %v179
    %239 = vmatpush1.msra.mxu0 %v178
    %240 = vmatprep.subr.mxu0 0.0
    %241 = vmatpush2.msra.mxu0 0.0
    %242 = vmatprep.subr.mxu0 0.0
    %243 = vmatpush2.msra.mxu0 0.0
    %244 = vmatprep.subr.mxu0 0.0
    %245 = vmatpush2.msra.mxu0 0.0
    %246 = vmatprep.subr.mxu0 0.0
    %247 = vmatpush2.msra.mxu0 0.0
    %248 = vmatprep.subr.mxu0 0.0
    %249 = vmatpush2.msra.mxu0 0.0
    %250 = vmatprep.subr.mxu0 0.0
    %251 = vmatpush2.msra.mxu0 0.0
    %252 = vmatprep.subr.mxu0 0.0
    %253 = vmatpush2.msra.mxu0 0.0
    %254 = vmatprep.subr.mxu0 0.0
    %255 = vmatpush2.msra.mxu0 0.0
    %256 = vmatprep.subr.mxu0 0.0
    %257 = vmatpush2.msra.mxu0 0.0
    %258 = vmatprep.subr.mxu0 0.0
    %259 = vmatpush2.msra.mxu0 0.0
    %260 = vmatprep.subr.mxu0 0.0
    %261 = vmatpush2.msra.mxu0 0.0
    %262 = vmatprep.subr.mxu0 0.0
    %263 = vmatpush2.msra.mxu0 0.0
    %264 = vmatprep.subr.mxu0 0.0
    %265 = vmatpush2.msra.mxu0 0.0
    %266 = vmatprep.subr.mxu0 0.0
    %267 = vmatpush2.msra.mxu0 0.0
    %268 = vmatprep.subr.mxu0 0.0
    %269 = vmatpush2.msra.mxu0 0.0
    %270 = vmatprep.subr.mxu0 0.0
    %271 = vmatpush2.msra.mxu0 0.0
    %272 = vmatprep.mubr.f32.mxu0 0.0
    %273 = vmatmul.mubr.f32.gmra.mxu0 %v206
    %v274 = vpop.f32.mrf.mxu0
    %v275 = vadd.f32 %v187, %v274
    %v276 = vpop.f32.mrf.mxu0
    %v277 = vadd.f32 %v191, %v276
    %278 = vdwg.mxu0
    %279 = vmatprep.subr.mxu0 0.0
    %280 = vmatpush1.msra.mxu0 0.0
    %281 = vmatprep.subr.mxu0 0.0
    %282 = vmatpush1.msra.mxu0 0.0
    %283 = vmatprep.subr.mxu0 0.0
    %284 = vmatpush1.msra.mxu0 0.0
    %285 = vmatprep.subr.mxu0 0.0
    %286 = vmatpush1.msra.mxu0 0.0
    %287 = vmatprep.subr.mxu0 0.0
    %288 = vmatpush1.msra.mxu0 0.0
    %289 = vmatprep.subr.mxu0 0.0
    %290 = vmatpush1.msra.mxu0 0.0
    %291 = vmatprep.subr.mxu0 0.0
    %292 = vmatpush1.msra.mxu0 0.0
    %293 = vmatprep.subr.mxu0 0.0
    %294 = vmatpush1.msra.mxu0 0.0
    %295 = vmatprep.subr.mxu0 0.0
    %296 = vmatpush1.msra.mxu0 0.0
    %297 = vmatprep.subr.mxu0 0.0
    %298 = vmatpush1.msra.mxu0 0.0
    %299 = vmatprep.subr.mxu0 0.0
    %300 = vmatpush1.msra.mxu0 0.0
    %301 = vmatprep.subr.mxu0 0.0
    %302 = vmatpush1.msra.mxu0 0.0
    %303 = vmatprep.subr.mxu0 0.0
    %304 = vmatpush1.msra.mxu0 0.0
    %305 = vmatprep.subr.mxu0 0.0
    %306 = vmatpush1.msra.mxu0 0.0
    %307 = vmatprep.subr.mxu0 0.0
    %308 = vmatpush1.msra.mxu0 0.0
    %309 = vmatprep.subr.mxu0 %v181
    %310 = vmatpush1.msra.mxu0 %v180
    %311 = vmatprep.subr.mxu0 0.0
    %312 = vmatpush2.msra.mxu0 0.0
    %313 = vmatprep.subr.mxu0 0.0
    %314 = vmatpush2.msra.mxu0 0.0
    %315 = vmatprep.subr.mxu0 0.0
    %316 = vmatpush2.msra.mxu0 0.0
    %317 = vmatprep.subr.mxu0 0.0
    %318 = vmatpush2.msra.mxu0 0.0
    %319 = vmatprep.subr.mxu0 0.0
    %320 = vmatpush2.msra.mxu0 0.0
    %321 = vmatprep.subr.mxu0 0.0
    %322 = vmatpush2.msra.mxu0 0.0
    %323 = vmatprep.subr.mxu0 0.0
    %324 = vmatpush2.msra.mxu0 0.0
    %325 = vmatprep.subr.mxu0 0.0
    %326 = vmatpush2.msra.mxu0 0.0
    %327 = vmatprep.subr.mxu0 0.0
    %328 = vmatpush2.msra.mxu0 0.0
    %329 = vmatprep.subr.mxu0 0.0
    %330 = vmatpush2.msra.mxu0 0.0
    %331 = vmatprep.subr.mxu0 0.0
    %332 = vmatpush2.msra.mxu0 0.0
    %333 = vmatprep.subr.mxu0 0.0
    %334 = vmatpush2.msra.mxu0 0.0
    %335 = vmatprep.subr.mxu0 0.0
    %336 = vmatpush2.msra.mxu0 0.0
    %337 = vmatprep.subr.mxu0 0.0
    %338 = vmatpush2.msra.mxu0 0.0
    %339 = vmatprep.subr.mxu0 0.0
    %340 = vmatpush2.msra.mxu0 0.0
    %341 = vmatprep.subr.mxu0 0.0
    %342 = vmatpush2.msra.mxu0 0.0
    %343 = vmatprep.mubr.f32.mxu0 0.0
    %344 = vmatmul.mubr.f32.gmra.mxu0 %v206
    %v345 = vpop.f32.mrf.mxu0
    %v346 = vadd.f32 %v195, %v345
    %v347 = vpop.f32.mrf.mxu0
    %v348 = vadd.f32 %v199, %v347
    %349 = vdwg.mxu0
    %v350 = vpack.c.bf16 %v275, %v275
    %v351 = vpack.c.bf16 %v277, %v277
    %v352 = vpack.c.bf16 %v346, %v346
    %v353 = vpack.c.bf16 %v348, %v348
    %v354 = vld [vmem:[%s3] sm:$0xff]
    %v355 = vld [vmem:[%s3 + $0x8] sm:$0xff]
    %v356 = vld [vmem:[%s3 + $0x10] sm:$0xff]
    %v357 = vld [vmem:[%s3 + $0x18] sm:$0xff]
    %v358 = vld [vmem:[%s3 + $0x20] sm:$0xff]
    %v359 = vld [vmem:[%s3 + $0x28] sm:$0xff]
    %v360 = vld [vmem:[%s3 + $0x30] sm:$0xff]
    %v361 = vld [vmem:[%s3 + $0x38] sm:$0xff]
    %v362 = vld [vmem:[%s3 + $0x40] sm:$0xff]
    %v363 = vld [vmem:[%s3 + $0x48] sm:$0xff]
    %v364 = vld [vmem:[%s3 + $0x50] sm:$0xff]
    %v365 = vld [vmem:[%s3 + $0x58] sm:$0xff]
    %v366 = vld [vmem:[%s3 + $0x60] sm:$0xff]
    %v367 = vld [vmem:[%s3 + $0x68] sm:$0xff]
    %v368 = vld [vmem:[%s3 + $0x70] sm:$0xff]
    %v369 = vld [vmem:[%s3 + $0x78] sm:$0xff]
    %v370 = vld [vmem:[%s3 + $0x80] sm:$0xff]
    %v371 = vld [vmem:[%s3 + $0x88] sm:$0xff]
    %v372 = vld [vmem:[%s3 + $0x90] sm:$0xff]
    %v373 = vld [vmem:[%s3 + $0x98] sm:$0xff]
    %v374 = vld [vmem:[%s3 + $0xa0] sm:$0xff]
    %v375 = vld [vmem:[%s3 + $0xa8] sm:$0xff]
    %v376 = vld [vmem:[%s3 + $0xb0] sm:$0xff]
    %v377 = vld [vmem:[%s3 + $0xb8] sm:$0xff]
    %v378 = vld [vmem:[%s3 + $0xc0] sm:$0xff]
    %v379 = vld [vmem:[%s3 + $0xc8] sm:$0xff]
    %v380 = vld [vmem:[%s3 + $0xd0] sm:$0xff]
    %v381 = vld [vmem:[%s3 + $0xd8] sm:$0xff]
    %v382 = vld [vmem:[%s3 + $0xe0] sm:$0xff]
    %v383 = vld [vmem:[%s3 + $0xe8] sm:$0xff]
    %v384 = vld [vmem:[%s3 + $0xf0] sm:$0xff]
    %v385 = vld [vmem:[%s3 + $0xf8] sm:$0xff]
    %v386 = vld [vmem:[%s3 + $0x100] sm:$0xff]
    %v387 = vld [vmem:[%s3 + $0x108] sm:$0xff]
    %v388 = vld [vmem:[%s3 + $0x110] sm:$0xff]
    %v389 = vld [vmem:[%s3 + $0x118] sm:$0xff]
    %v390 = vld [vmem:[%s3 + $0x120] sm:$0xff]
    %v391 = vld [vmem:[%s3 + $0x128] sm:$0xff]
    %v392 = vld [vmem:[%s3 + $0x130] sm:$0xff]
    %v393 = vld [vmem:[%s3 + $0x138] sm:$0xff]
    %v394 = vld [vmem:[%s3 + $0x140] sm:$0xff]
    %v395 = vld [vmem:[%s3 + $0x148] sm:$0xff]
    %v396 = vld [vmem:[%s3 + $0x150] sm:$0xff]
    %v397 = vld [vmem:[%s3 + $0x158] sm:$0xff]
    %v398 = vld [vmem:[%s3 + $0x160] sm:$0xff]
    %v399 = vld [vmem:[%s3 + $0x168] sm:$0xff]
    %v400 = vld [vmem:[%s3 + $0x170] sm:$0xff]
    %v401 = vld [vmem:[%s3 + $0x178] sm:$0xff]
    %v402 = vld [vmem:[%s3 + $0x180] sm:$0xff]
    %v403 = vld [vmem:[%s3 + $0x188] sm:$0xff]
    %v404 = vld [vmem:[%s3 + $0x190] sm:$0xff]
    %v405 = vld [vmem:[%s3 + $0x198] sm:$0xff]
    %v406 = vld [vmem:[%s3 + $0x1a0] sm:$0xff]
    %v407 = vld [vmem:[%s3 + $0x1a8] sm:$0xff]
    %v408 = vld [vmem:[%s3 + $0x1b0] sm:$0xff]
    %v409 = vld [vmem:[%s3 + $0x1b8] sm:$0xff]
    %v410 = vld [vmem:[%s3 + $0x1c0] sm:$0xff]
    %v411 = vld [vmem:[%s3 + $0x1c8] sm:$0xff]
    %v412 = vld [vmem:[%s3 + $0x1d0] sm:$0xff]
    %v413 = vld [vmem:[%s3 + $0x1d8] sm:$0xff]
    %v414 = vld [vmem:[%s3 + $0x1e0] sm:$0xff]
    %v415 = vld [vmem:[%s3 + $0x1e8] sm:$0xff]
    %v416 = vld [vmem:[%s3 + $0x1f0] sm:$0xff]
    %v417 = vld [vmem:[%s3 + $0x1f8] sm:$0xff]
    %v418 = vld [vmem:[%s3 + $0x200] sm:$0xff]
    %v419 = vld [vmem:[%s3 + $0x208] sm:$0xff]
    %v420 = vld [vmem:[%s3 + $0x210] sm:$0xff]
    %v421 = vld [vmem:[%s3 + $0x218] sm:$0xff]
    %v422 = vld [vmem:[%s3 + $0x220] sm:$0xff]
    %v423 = vld [vmem:[%s3 + $0x228] sm:$0xff]
    %v424 = vld [vmem:[%s3 + $0x230] sm:$0xff]
    %v425 = vld [vmem:[%s3 + $0x238] sm:$0xff]
    %v426 = vld [vmem:[%s3 + $0x240] sm:$0xff]
    %v427 = vld [vmem:[%s3 + $0x248] sm:$0xff]
    %v428 = vld [vmem:[%s3 + $0x250] sm:$0xff]
    %v429 = vld [vmem:[%s3 + $0x258] sm:$0xff]
    %v430 = vld [vmem:[%s3 + $0x260] sm:$0xff]
    %v431 = vld [vmem:[%s3 + $0x268] sm:$0xff]
    %v432 = vld [vmem:[%s3 + $0x270] sm:$0xff]
    %v433 = vld [vmem:[%s3 + $0x278] sm:$0xff]
    %v434 = vld [vmem:[%s3 + $0x280] sm:$0xff]
    %v435 = vld [vmem:[%s3 + $0x288] sm:$0xff]
    %v436 = vld [vmem:[%s3 + $0x290] sm:$0xff]
    %v437 = vld [vmem:[%s3 + $0x298] sm:$0xff]
    %v438 = vld [vmem:[%s3 + $0x2a0] sm:$0xff]
    %v439 = vld [vmem:[%s3 + $0x2a8] sm:$0xff]
    %v440 = vld [vmem:[%s3 + $0x2b0] sm:$0xff]
    %v441 = vld [vmem:[%s3 + $0x2b8] sm:$0xff]
    %v442 = vld [vmem:[%s3 + $0x2c0] sm:$0xff]
    %v443 = vld [vmem:[%s3 + $0x2c8] sm:$0xff]
    %v444 = vld [vmem:[%s3 + $0x2d0] sm:$0xff]
    %v445 = vld [vmem:[%s3 + $0x2d8] sm:$0xff]
    %v446 = vld [vmem:[%s3 + $0x2e0] sm:$0xff]
    %v447 = vld [vmem:[%s3 + $0x2e8] sm:$0xff]
    %v448 = vld [vmem:[%s3 + $0x2f0] sm:$0xff]
    %v449 = vld [vmem:[%s3 + $0x2f8] sm:$0xff]
    %v450 = vld [vmem:[%s3 + $0x300] sm:$0xff]
    %v451 = vld [vmem:[%s3 + $0x308] sm:$0xff]
    %v452 = vld [vmem:[%s3 + $0x310] sm:$0xff]
    %v453 = vld [vmem:[%s3 + $0x318] sm:$0xff]
    %v454 = vld [vmem:[%s3 + $0x320] sm:$0xff]
    %v455 = vld [vmem:[%s3 + $0x328] sm:$0xff]
    %v456 = vld [vmem:[%s3 + $0x330] sm:$0xff]
    %v457 = vld [vmem:[%s3 + $0x338] sm:$0xff]
    %v458 = vld [vmem:[%s3 + $0x340] sm:$0xff]
    %v459 = vld [vmem:[%s3 + $0x348] sm:$0xff]
    %v460 = vld [vmem:[%s3 + $0x350] sm:$0xff]
    %v461 = vld [vmem:[%s3 + $0x358] sm:$0xff]
    %v462 = vld [vmem:[%s3 + $0x360] sm:$0xff]
    %v463 = vld [vmem:[%s3 + $0x368] sm:$0xff]
    %v464 = vld [vmem:[%s3 + $0x370] sm:$0xff]
    %v465 = vld [vmem:[%s3 + $0x378] sm:$0xff]
    %v466 = vld [vmem:[%s3 + $0x380] sm:$0xff]
    %v467 = vld [vmem:[%s3 + $0x388] sm:$0xff]
    %v468 = vld [vmem:[%s3 + $0x390] sm:$0xff]
    %v469 = vld [vmem:[%s3 + $0x398] sm:$0xff]
    %v470 = vld [vmem:[%s3 + $0x3a0] sm:$0xff]
    %v471 = vld [vmem:[%s3 + $0x3a8] sm:$0xff]
    %v472 = vld [vmem:[%s3 + $0x3b0] sm:$0xff]
    %v473 = vld [vmem:[%s3 + $0x3b8] sm:$0xff]
    %v474 = vld [vmem:[%s3 + $0x3c0] sm:$0xff]
    %v475 = vld [vmem:[%s3 + $0x3c8] sm:$0xff]
    %v476 = vld [vmem:[%s3 + $0x3d0] sm:$0xff]
    %v477 = vld [vmem:[%s3 + $0x3d8] sm:$0xff]
    %v478 = vld [vmem:[%s3 + $0x3e0] sm:$0xff]
    %v479 = vld [vmem:[%s3 + $0x3e8] sm:$0xff]
    %v480 = vld [vmem:[%s3 + $0x3f0] sm:$0xff]
    %v481 = vld [vmem:[%s3 + $0x3f8] sm:$0xff]
    %v482 = vld [vmem:[%s4] sm:$0xf]
    %v484 = vlaneseq
    %v485 = vshrl.u32 %v484, 7
    %v486 = vsub.s32 0, %v485
    %v487 = vrot.slane %v482, %v486
    %v488 = vlaneseq
    %v489 = vshrl.u32 %v488, 7
    %v490 = vsub.s32 1, %v489
    %v491 = vrot.slane %v482, %v490
    %v492 = vlaneseq
    %v493 = vshrl.u32 %v492, 7
    %v494 = vsub.s32 2, %v493
    %v495 = vrot.slane %v482, %v494
    %v496 = vlaneseq
    %v497 = vshrl.u32 %v496, 7
    %v498 = vsub.s32 3, %v497
    %v499 = vrot.slane %v482, %v498
    %v632 = vunpack.c.l.b16 %v354
    %v633 = vunpack.c.h.b16 %v354
    %v634 = vunpack.c.l.b16 %v355
    %v635 = vunpack.c.h.b16 %v355
    %v636 = vunpack.c.l.b16 %v356
    %v637 = vunpack.c.h.b16 %v356
    %v638 = vunpack.c.l.b16 %v357
    %v639 = vunpack.c.h.b16 %v357
    %v640 = vunpack.c.l.b16 %v358
    %v641 = vunpack.c.h.b16 %v358
    %v642 = vunpack.c.l.b16 %v359
    %v643 = vunpack.c.h.b16 %v359
    %v644 = vunpack.c.l.b16 %v360
    %v645 = vunpack.c.h.b16 %v360
    %v646 = vunpack.c.l.b16 %v361
    %v647 = vunpack.c.h.b16 %v361
    %v648 = vunpack.c.l.b16 %v362
    %v649 = vunpack.c.h.b16 %v362
    %v650 = vunpack.c.l.b16 %v363
    %v651 = vunpack.c.h.b16 %v363
    %v652 = vunpack.c.l.b16 %v364
    %v653 = vunpack.c.h.b16 %v364
    %v654 = vunpack.c.l.b16 %v365
    %v655 = vunpack.c.h.b16 %v365
    %v656 = vunpack.c.l.b16 %v366
    %v657 = vunpack.c.h.b16 %v366
    %v658 = vunpack.c.l.b16 %v367
    %v659 = vunpack.c.h.b16 %v367
    %v660 = vunpack.c.l.b16 %v368
    %v661 = vunpack.c.h.b16 %v368
    %v662 = vunpack.c.l.b16 %v369
    %v663 = vunpack.c.h.b16 %v369
    %v664 = vunpack.c.l.b16 %v370
    %v665 = vunpack.c.h.b16 %v370
    %v666 = vunpack.c.l.b16 %v371
    %v667 = vunpack.c.h.b16 %v371
    %v668 = vunpack.c.l.b16 %v372
    %v669 = vunpack.c.h.b16 %v372
    %v670 = vunpack.c.l.b16 %v373
    %v671 = vunpack.c.h.b16 %v373
    %v672 = vunpack.c.l.b16 %v374
    %v673 = vunpack.c.h.b16 %v374
    %v674 = vunpack.c.l.b16 %v375
    %v675 = vunpack.c.h.b16 %v375
    %v676 = vunpack.c.l.b16 %v376
    %v677 = vunpack.c.h.b16 %v376
    %v678 = vunpack.c.l.b16 %v377
    %v679 = vunpack.c.h.b16 %v377
    %v680 = vunpack.c.l.b16 %v378
    %v681 = vunpack.c.h.b16 %v378
    %v682 = vunpack.c.l.b16 %v379
    %v683 = vunpack.c.h.b16 %v379
    %v684 = vunpack.c.l.b16 %v380
    %v685 = vunpack.c.h.b16 %v380
    %v686 = vunpack.c.l.b16 %v381
    %v687 = vunpack.c.h.b16 %v381
    %v688 = vunpack.c.l.b16 %v382
    %v689 = vunpack.c.h.b16 %v382
    %v690 = vunpack.c.l.b16 %v383
    %v691 = vunpack.c.h.b16 %v383
    %v692 = vunpack.c.l.b16 %v384
    %v693 = vunpack.c.h.b16 %v384
    %v694 = vunpack.c.l.b16 %v385
    %v695 = vunpack.c.h.b16 %v385
    %v696 = vunpack.c.l.b16 %v386
    %v697 = vunpack.c.h.b16 %v386
    %v698 = vunpack.c.l.b16 %v387
    %v699 = vunpack.c.h.b16 %v387
    %v700 = vunpack.c.l.b16 %v388
    %v701 = vunpack.c.h.b16 %v388
    %v702 = vunpack.c.l.b16 %v389
    %v703 = vunpack.c.h.b16 %v389
    %v704 = vunpack.c.l.b16 %v390
    %v705 = vunpack.c.h.b16 %v390
    %v706 = vunpack.c.l.b16 %v391
    %v707 = vunpack.c.h.b16 %v391
    %v708 = vunpack.c.l.b16 %v392
    %v709 = vunpack.c.h.b16 %v392
    %v710 = vunpack.c.l.b16 %v393
    %v711 = vunpack.c.h.b16 %v393
    %v712 = vunpack.c.l.b16 %v394
    %v713 = vunpack.c.h.b16 %v394
    %v714 = vunpack.c.l.b16 %v395
    %v715 = vunpack.c.h.b16 %v395
    %v716 = vunpack.c.l.b16 %v396
    %v717 = vunpack.c.h.b16 %v396
    %v718 = vunpack.c.l.b16 %v397
    %v719 = vunpack.c.h.b16 %v397
    %v720 = vunpack.c.l.b16 %v398
    %v721 = vunpack.c.h.b16 %v398
    %v722 = vunpack.c.l.b16 %v399
    %v723 = vunpack.c.h.b16 %v399
    %v724 = vunpack.c.l.b16 %v400
    %v725 = vunpack.c.h.b16 %v400
    %v726 = vunpack.c.l.b16 %v401
    %v727 = vunpack.c.h.b16 %v401
    %v728 = vunpack.c.l.b16 %v402
    %v729 = vunpack.c.h.b16 %v402
    %v730 = vunpack.c.l.b16 %v403
    %v731 = vunpack.c.h.b16 %v403
    %v732 = vunpack.c.l.b16 %v404
    %v733 = vunpack.c.h.b16 %v404
    %v734 = vunpack.c.l.b16 %v405
    %v735 = vunpack.c.h.b16 %v405
    %v736 = vunpack.c.l.b16 %v406
    %v737 = vunpack.c.h.b16 %v406
    %v738 = vunpack.c.l.b16 %v407
    %v739 = vunpack.c.h.b16 %v407
    %v740 = vunpack.c.l.b16 %v408
    %v741 = vunpack.c.h.b16 %v408
    %v742 = vunpack.c.l.b16 %v409
    %v743 = vunpack.c.h.b16 %v409
    %v744 = vunpack.c.l.b16 %v410
    %v745 = vunpack.c.h.b16 %v410
    %v746 = vunpack.c.l.b16 %v411
    %v747 = vunpack.c.h.b16 %v411
    %v748 = vunpack.c.l.b16 %v412
    %v749 = vunpack.c.h.b16 %v412
    %v750 = vunpack.c.l.b16 %v413
    %v751 = vunpack.c.h.b16 %v413
    %v752 = vunpack.c.l.b16 %v414
    %v753 = vunpack.c.h.b16 %v414
    %v754 = vunpack.c.l.b16 %v415
    %v755 = vunpack.c.h.b16 %v415
    %v756 = vunpack.c.l.b16 %v416
    %v757 = vunpack.c.h.b16 %v416
    %v758 = vunpack.c.l.b16 %v417
    %v759 = vunpack.c.h.b16 %v417
    %v760 = vunpack.c.l.b16 %v418
    %v761 = vunpack.c.h.b16 %v418
    %v762 = vunpack.c.l.b16 %v419
    %v763 = vunpack.c.h.b16 %v419
    %v764 = vunpack.c.l.b16 %v420
    %v765 = vunpack.c.h.b16 %v420
    %v766 = vunpack.c.l.b16 %v421
    %v767 = vunpack.c.h.b16 %v421
    %v768 = vunpack.c.l.b16 %v422
    %v769 = vunpack.c.h.b16 %v422
    %v770 = vunpack.c.l.b16 %v423
    %v771 = vunpack.c.h.b16 %v423
    %v772 = vunpack.c.l.b16 %v424
    %v773 = vunpack.c.h.b16 %v424
    %v774 = vunpack.c.l.b16 %v425
    %v775 = vunpack.c.h.b16 %v425
    %v776 = vunpack.c.l.b16 %v426
    %v777 = vunpack.c.h.b16 %v426
    %v778 = vunpack.c.l.b16 %v427
    %v779 = vunpack.c.h.b16 %v427
    %v780 = vunpack.c.l.b16 %v428
    %v781 = vunpack.c.h.b16 %v428
    %v782 = vunpack.c.l.b16 %v429
    %v783 = vunpack.c.h.b16 %v429
    %v784 = vunpack.c.l.b16 %v430
    %v785 = vunpack.c.h.b16 %v430
    %v786 = vunpack.c.l.b16 %v431
    %v787 = vunpack.c.h.b16 %v431
    %v788 = vunpack.c.l.b16 %v432
    %v789 = vunpack.c.h.b16 %v432
    %v790 = vunpack.c.l.b16 %v433
    %v791 = vunpack.c.h.b16 %v433
    %v792 = vunpack.c.l.b16 %v434
    %v793 = vunpack.c.h.b16 %v434
    %v794 = vunpack.c.l.b16 %v435
    %v795 = vunpack.c.h.b16 %v435
    %v796 = vunpack.c.l.b16 %v436
    %v797 = vunpack.c.h.b16 %v436
    %v798 = vunpack.c.l.b16 %v437
    %v799 = vunpack.c.h.b16 %v437
    %v800 = vunpack.c.l.b16 %v438
    %v801 = vunpack.c.h.b16 %v438
    %v802 = vunpack.c.l.b16 %v439
    %v803 = vunpack.c.h.b16 %v439
    %v804 = vunpack.c.l.b16 %v440
    %v805 = vunpack.c.h.b16 %v440
    %v806 = vunpack.c.l.b16 %v441
    %v807 = vunpack.c.h.b16 %v441
    %v808 = vunpack.c.l.b16 %v442
    %v809 = vunpack.c.h.b16 %v442
    %v810 = vunpack.c.l.b16 %v443
    %v811 = vunpack.c.h.b16 %v443
    %v812 = vunpack.c.l.b16 %v444
    %v813 = vunpack.c.h.b16 %v444
    %v814 = vunpack.c.l.b16 %v445
    %v815 = vunpack.c.h.b16 %v445
    %v816 = vunpack.c.l.b16 %v446
    %v817 = vunpack.c.h.b16 %v446
    %v818 = vunpack.c.l.b16 %v447
    %v819 = vunpack.c.h.b16 %v447
    %v820 = vunpack.c.l.b16 %v448
    %v821 = vunpack.c.h.b16 %v448
    %v822 = vunpack.c.l.b16 %v449
    %v823 = vunpack.c.h.b16 %v449
    %v824 = vunpack.c.l.b16 %v450
    %v825 = vunpack.c.h.b16 %v450
    %v826 = vunpack.c.l.b16 %v451
    %v827 = vunpack.c.h.b16 %v451
    %v828 = vunpack.c.l.b16 %v452
    %v829 = vunpack.c.h.b16 %v452
    %v830 = vunpack.c.l.b16 %v453
    %v831 = vunpack.c.h.b16 %v453
    %v832 = vunpack.c.l.b16 %v454
    %v833 = vunpack.c.h.b16 %v454
    %v834 = vunpack.c.l.b16 %v455
    %v835 = vunpack.c.h.b16 %v455
    %v836 = vunpack.c.l.b16 %v456
    %v837 = vunpack.c.h.b16 %v456
    %v838 = vunpack.c.l.b16 %v457
    %v839 = vunpack.c.h.b16 %v457
    %v840 = vunpack.c.l.b16 %v458
    %v841 = vunpack.c.h.b16 %v458
    %v842 = vunpack.c.l.b16 %v459
    %v843 = vunpack.c.h.b16 %v459
    %v844 = vunpack.c.l.b16 %v460
    %v845 = vunpack.c.h.b16 %v460
    %v846 = vunpack.c.l.b16 %v461
    %v847 = vunpack.c.h.b16 %v461
    %v848 = vunpack.c.l.b16 %v462
    %v849 = vunpack.c.h.b16 %v462
    %v850 = vunpack.c.l.b16 %v463
    %v851 = vunpack.c.h.b16 %v463
    %v852 = vunpack.c.l.b16 %v464
    %v853 = vunpack.c.h.b16 %v464
    %v854 = vunpack.c.l.b16 %v465
    %v855 = vunpack.c.h.b16 %v465
    %v856 = vunpack.c.l.b16 %v466
    %v857 = vunpack.c.h.b16 %v466
    %v858 = vunpack.c.l.b16 %v467
    %v859 = vunpack.c.h.b16 %v467
    %v860 = vunpack.c.l.b16 %v468
    %v861 = vunpack.c.h.b16 %v468
    %v862 = vunpack.c.l.b16 %v469
    %v863 = vunpack.c.h.b16 %v469
    %v864 = vunpack.c.l.b16 %v470
    %v865 = vunpack.c.h.b16 %v470
    %v866 = vunpack.c.l.b16 %v471
    %v867 = vunpack.c.h.b16 %v471
    %v868 = vunpack.c.l.b16 %v472
    %v869 = vunpack.c.h.b16 %v472
    %v870 = vunpack.c.l.b16 %v473
    %v871 = vunpack.c.h.b16 %v473
    %v872 = vunpack.c.l.b16 %v474
    %v873 = vunpack.c.h.b16 %v474
    %v874 = vunpack.c.l.b16 %v475
    %v875 = vunpack.c.h.b16 %v475
    %v876 = vunpack.c.l.b16 %v476
    %v877 = vunpack.c.h.b16 %v476
    %v878 = vunpack.c.l.b16 %v477
    %v879 = vunpack.c.h.b16 %v477
    %v880 = vunpack.c.l.b16 %v478
    %v881 = vunpack.c.h.b16 %v478
    %v882 = vunpack.c.l.b16 %v479
    %v883 = vunpack.c.h.b16 %v479
    %v884 = vunpack.c.l.b16 %v480
    %v885 = vunpack.c.h.b16 %v480
    %v886 = vunpack.c.l.b16 %v481
    %v887 = vunpack.c.h.b16 %v481
    %v888 = vpack.c.b16 %v636, %v632
    %v889 = vpack.c.b16 %v637, %v633
    %v890 = vpack.c.b16 %v638, %v634
    %v891 = vpack.c.b16 %v639, %v635
    %v892 = vpack.c.b16 %v644, %v640
    %v893 = vpack.c.b16 %v645, %v641
    %v894 = vpack.c.b16 %v646, %v642
    %v895 = vpack.c.b16 %v647, %v643
    %v896 = vpack.c.b16 %v652, %v648
    %v897 = vpack.c.b16 %v653, %v649
    %v898 = vpack.c.b16 %v654, %v650
    %v899 = vpack.c.b16 %v655, %v651
    %v900 = vpack.c.b16 %v660, %v656
    %v901 = vpack.c.b16 %v661, %v657
    %v902 = vpack.c.b16 %v662, %v658
    %v903 = vpack.c.b16 %v663, %v659
    %v904 = vpack.c.b16 %v668, %v664
    %v905 = vpack.c.b16 %v669, %v665
    %v906 = vpack.c.b16 %v670, %v666
    %v907 = vpack.c.b16 %v671, %v667
    %v908 = vpack.c.b16 %v676, %v672
    %v909 = vpack.c.b16 %v677, %v673
    %v910 = vpack.c.b16 %v678, %v674
    %v911 = vpack.c.b16 %v679, %v675
    %v912 = vpack.c.b16 %v684, %v680
    %v913 = vpack.c.b16 %v685, %v681
    %v914 = vpack.c.b16 %v686, %v682
    %v915 = vpack.c.b16 %v687, %v683
    %v916 = vpack.c.b16 %v692, %v688
    %v917 = vpack.c.b16 %v693, %v689
    %v918 = vpack.c.b16 %v694, %v690
    %v919 = vpack.c.b16 %v695, %v691
    %v920 = vpack.c.b16 %v700, %v696
    %v921 = vpack.c.b16 %v701, %v697
    %v922 = vpack.c.b16 %v702, %v698
    %v923 = vpack.c.b16 %v703, %v699
    %v924 = vpack.c.b16 %v708, %v704
    %v925 = vpack.c.b16 %v709, %v705
    %v926 = vpack.c.b16 %v710, %v706
    %v927 = vpack.c.b16 %v711, %v707
    %v928 = vpack.c.b16 %v716, %v712
    %v929 = vpack.c.b16 %v717, %v713
    %v930 = vpack.c.b16 %v718, %v714
    %v931 = vpack.c.b16 %v719, %v715
    %v932 = vpack.c.b16 %v724, %v720
    %v933 = vpack.c.b16 %v725, %v721
    %v934 = vpack.c.b16 %v726, %v722
    %v935 = vpack.c.b16 %v727, %v723
    %v936 = vpack.c.b16 %v732, %v728
    %v937 = vpack.c.b16 %v733, %v729
    %v938 = vpack.c.b16 %v734, %v730
    %v939 = vpack.c.b16 %v735, %v731
    %v940 = vpack.c.b16 %v740, %v736
    %v941 = vpack.c.b16 %v741, %v737
    %v942 = vpack.c.b16 %v742, %v738
    %v943 = vpack.c.b16 %v743, %v739
    %v944 = vpack.c.b16 %v748, %v744
    %v945 = vpack.c.b16 %v749, %v745
    %v946 = vpack.c.b16 %v750, %v746
    %v947 = vpack.c.b16 %v751, %v747
    %v948 = vpack.c.b16 %v756, %v752
    %v949 = vpack.c.b16 %v757, %v753
    %v950 = vpack.c.b16 %v758, %v754
    %v951 = vpack.c.b16 %v759, %v755
    %v952 = vpack.c.b16 %v764, %v760
    %v953 = vpack.c.b16 %v765, %v761
    %v954 = vpack.c.b16 %v766, %v762
    %v955 = vpack.c.b16 %v767, %v763
    %v956 = vpack.c.b16 %v772, %v768
    %v957 = vpack.c.b16 %v773, %v769
    %v958 = vpack.c.b16 %v774, %v770
    %v959 = vpack.c.b16 %v775, %v771
    %v960 = vpack.c.b16 %v780, %v776
    %v961 = vpack.c.b16 %v781, %v777
    %v962 = vpack.c.b16 %v782, %v778
    %v963 = vpack.c.b16 %v783, %v779
    %v964 = vpack.c.b16 %v788, %v784
    %v965 = vpack.c.b16 %v789, %v785
    %v966 = vpack.c.b16 %v790, %v786
    %v967 = vpack.c.b16 %v791, %v787
    %v968 = vpack.c.b16 %v796, %v792
    %v969 = vpack.c.b16 %v797, %v793
    %v970 = vpack.c.b16 %v798, %v794
    %v971 = vpack.c.b16 %v799, %v795
    %v972 = vpack.c.b16 %v804, %v800
    %v973 = vpack.c.b16 %v805, %v801
    %v974 = vpack.c.b16 %v806, %v802
    %v975 = vpack.c.b16 %v807, %v803
    %v976 = vpack.c.b16 %v812, %v808
    %v977 = vpack.c.b16 %v813, %v809
    %v978 = vpack.c.b16 %v814, %v810
    %v979 = vpack.c.b16 %v815, %v811
    %v980 = vpack.c.b16 %v820, %v816
    %v981 = vpack.c.b16 %v821, %v817
    %v982 = vpack.c.b16 %v822, %v818
    %v983 = vpack.c.b16 %v823, %v819
    %v984 = vpack.c.b16 %v828, %v824
    %v985 = vpack.c.b16 %v829, %v825
    %v986 = vpack.c.b16 %v830, %v826
    %v987 = vpack.c.b16 %v831, %v827
    %v988 = vpack.c.b16 %v836, %v832
    %v989 = vpack.c.b16 %v837, %v833
    %v990 = vpack.c.b16 %v838, %v834
    %v991 = vpack.c.b16 %v839, %v835
    %v992 = vpack.c.b16 %v844, %v840
    %v993 = vpack.c.b16 %v845, %v841
    %v994 = vpack.c.b16 %v846, %v842
    %v995 = vpack.c.b16 %v847, %v843
    %v996 = vpack.c.b16 %v852, %v848
    %v997 = vpack.c.b16 %v853, %v849
    %v998 = vpack.c.b16 %v854, %v850
    %v999 = vpack.c.b16 %v855, %v851
    %v1000 = vpack.c.b16 %v860, %v856
    %v1001 = vpack.c.b16 %v861, %v857
    %v1002 = vpack.c.b16 %v862, %v858
    %v1003 = vpack.c.b16 %v863, %v859
    %v1004 = vpack.c.b16 %v868, %v864
    %v1005 = vpack.c.b16 %v869, %v865
    %v1006 = vpack.c.b16 %v870, %v866
    %v1007 = vpack.c.b16 %v871, %v867
    %v1008 = vpack.c.b16 %v876, %v872
    %v1009 = vpack.c.b16 %v877, %v873
    %v1010 = vpack.c.b16 %v878, %v874
    %v1011 = vpack.c.b16 %v879, %v875
    %v1012 = vpack.c.b16 %v884, %v880
    %v1013 = vpack.c.b16 %v885, %v881
    %v1014 = vpack.c.b16 %v886, %v882
    %v1015 = vpack.c.b16 %v887, %v883
    %1144 = vmatprep.subr.bf16.mxu0 %v917
    %1145 = vmatpush1.bf16.msra.mxu0 %v916
    %1146 = vmatprep.subr.bf16.mxu0 %v913
    %1147 = vmatpush1.bf16.msra.mxu0 %v912
    %1148 = vmatprep.subr.bf16.mxu0 %v909
    %1149 = vmatpush1.bf16.msra.mxu0 %v908
    %1150 = vmatprep.subr.bf16.mxu0 %v905
    %1151 = vmatpush1.bf16.msra.mxu0 %v904
    %1152 = vmatprep.subr.bf16.mxu0 %v901
    %1153 = vmatpush1.bf16.msra.mxu0 %v900
    %1154 = vmatprep.subr.bf16.mxu0 %v897
    %1155 = vmatpush1.bf16.msra.mxu0 %v896
    %1156 = vmatprep.subr.bf16.mxu0 %v893
    %1157 = vmatpush1.bf16.msra.mxu0 %v892
    %1158 = vmatprep.subr.bf16.mxu0 %v889
    %1159 = vmatpush1.bf16.msra.mxu0 %v888
    %1160 = vmatprep.subr.bf16.mxu0 %v949
    %1161 = vmatpush2.bf16.msra.mxu0 %v948
    %1162 = vmatprep.subr.bf16.mxu0 %v945
    %1163 = vmatpush2.bf16.msra.mxu0 %v944
    %1164 = vmatprep.subr.bf16.mxu0 %v941
    %1165 = vmatpush2.bf16.msra.mxu0 %v940
    %1166 = vmatprep.subr.bf16.mxu0 %v937
    %1167 = vmatpush2.bf16.msra.mxu0 %v936
    %1168 = vmatprep.subr.bf16.mxu0 %v933
    %1169 = vmatpush2.bf16.msra.mxu0 %v932
    %1170 = vmatprep.subr.bf16.mxu0 %v929
    %1171 = vmatpush2.bf16.msra.mxu0 %v928
    %1172 = vmatprep.subr.bf16.mxu0 %v925
    %1173 = vmatpush2.bf16.msra.mxu0 %v924
    %1174 = vmatprep.subr.bf16.mxu0 %v921
    %1175 = vmatpush2.bf16.msra.mxu0 %v920
    %1176 = vmatprep.mubr.bf16.mxu0 %v351
    %1177 = vmatmul.mubr.bf16.gmra.mxu0 %v350
    %v1178 = vpop.f32.mrf.mxu0
    %v1179 = vadd.f32 %v487, %v1178
    %v1180 = vpop.f32.mrf.mxu0
    %v1181 = vadd.f32 %v491, %v1180
    %v1182 = vpop.f32.mrf.mxu0
    %v1183 = vpop.f32.mrf.mxu0
    %1184 = vdwg.mxu0
    %1185 = vmatprep.subr.bf16.mxu0 %v981
    %1186 = vmatpush1.bf16.msra.mxu0 %v980
    %1187 = vmatprep.subr.bf16.mxu0 %v977
    %1188 = vmatpush1.bf16.msra.mxu0 %v976
    %1189 = vmatprep.subr.bf16.mxu0 %v973
    %1190 = vmatpush1.bf16.msra.mxu0 %v972
    %1191 = vmatprep.subr.bf16.mxu0 %v969
    %1192 = vmatpush1.bf16.msra.mxu0 %v968
    %1193 = vmatprep.subr.bf16.mxu0 %v965
    %1194 = vmatpush1.bf16.msra.mxu0 %v964
    %1195 = vmatprep.subr.bf16.mxu0 %v961
    %1196 = vmatpush1.bf16.msra.mxu0 %v960
    %1197 = vmatprep.subr.bf16.mxu0 %v957
    %1198 = vmatpush1.bf16.msra.mxu0 %v956
    %1199 = vmatprep.subr.bf16.mxu0 %v953
    %1200 = vmatpush1.bf16.msra.mxu0 %v952
    %1201 = vmatprep.subr.bf16.mxu0 %v1013
    %1202 = vmatpush2.bf16.msra.mxu0 %v1012
    %1203 = vmatprep.subr.bf16.mxu0 %v1009
    %1204 = vmatpush2.bf16.msra.mxu0 %v1008
    %1205 = vmatprep.subr.bf16.mxu0 %v1005
    %1206 = vmatpush2.bf16.msra.mxu0 %v1004
    %1207 = vmatprep.subr.bf16.mxu0 %v1001
    %1208 = vmatpush2.bf16.msra.mxu0 %v1000
    %1209 = vmatprep.subr.bf16.mxu0 %v997
    %1210 = vmatpush2.bf16.msra.mxu0 %v996
    %1211 = vmatprep.subr.bf16.mxu0 %v993
    %1212 = vmatpush2.bf16.msra.mxu0 %v992
    %1213 = vmatprep.subr.bf16.mxu0 %v989
    %1214 = vmatpush2.bf16.msra.mxu0 %v988
    %1215 = vmatprep.subr.bf16.mxu0 %v985
    %1216 = vmatpush2.bf16.msra.mxu0 %v984
    %1217 = vmatprep.mubr.bf16.mxu0 %v353
    %1218 = vmatmul.mubr.bf16.gmra.mxu0 %v352
    %v1219 = vpop.f32.mrf.mxu0
    %v1220 = vadd.f32 %v1179, %v1219
    %v1221 = vpop.f32.mrf.mxu0
    %v1222 = vadd.f32 %v1181, %v1221
    %v1223 = vpop.f32.mrf.mxu0
    %v1224 = vpop.f32.mrf.mxu0
    %1225 = vdwg.mxu0
    %1226 = vmatprep.subr.bf16.mxu0 %v919
    %1227 = vmatpush1.bf16.msra.mxu0 %v918
    %1228 = vmatprep.subr.bf16.mxu0 %v915
    %1229 = vmatpush1.bf16.msra.mxu0 %v914
    %1230 = vmatprep.subr.bf16.mxu0 %v911
    %1231 = vmatpush1.bf16.msra.mxu0 %v910
    %1232 = vmatprep.subr.bf16.mxu0 %v907
    %1233 = vmatpush1.bf16.msra.mxu0 %v906
    %1234 = vmatprep.subr.bf16.mxu0 %v903
    %1235 = vmatpush1.bf16.msra.mxu0 %v902
    %1236 = vmatprep.subr.bf16.mxu0 %v899
    %1237 = vmatpush1.bf16.msra.mxu0 %v898
    %1238 = vmatprep.subr.bf16.mxu0 %v895
    %1239 = vmatpush1.bf16.msra.mxu0 %v894
    %1240 = vmatprep.subr.bf16.mxu0 %v891
    %1241 = vmatpush1.bf16.msra.mxu0 %v890
    %1242 = vmatprep.subr.bf16.mxu0 %v951
    %1243 = vmatpush2.bf16.msra.mxu0 %v950
    %1244 = vmatprep.subr.bf16.mxu0 %v947
    %1245 = vmatpush2.bf16.msra.mxu0 %v946
    %1246 = vmatprep.subr.bf16.mxu0 %v943
    %1247 = vmatpush2.bf16.msra.mxu0 %v942
    %1248 = vmatprep.subr.bf16.mxu0 %v939
    %1249 = vmatpush2.bf16.msra.mxu0 %v938
    %1250 = vmatprep.subr.bf16.mxu0 %v935
    %1251 = vmatpush2.bf16.msra.mxu0 %v934
    %1252 = vmatprep.subr.bf16.mxu0 %v931
    %1253 = vmatpush2.bf16.msra.mxu0 %v930
    %1254 = vmatprep.subr.bf16.mxu0 %v927
    %1255 = vmatpush2.bf16.msra.mxu0 %v926
    %1256 = vmatprep.subr.bf16.mxu0 %v923
    %1257 = vmatpush2.bf16.msra.mxu0 %v922
    %1258 = vmatprep.mubr.bf16.mxu0 %v351
    %1259 = vmatmul.mubr.bf16.gmra.mxu0 %v350
    %v1260 = vpop.f32.mrf.mxu0
    %v1261 = vadd.f32 %v495, %v1260
    %v1262 = vpop.f32.mrf.mxu0
    %v1263 = vadd.f32 %v499, %v1262
    %v1264 = vpop.f32.mrf.mxu0
    %v1265 = vpop.f32.mrf.mxu0
    %1266 = vdwg.mxu0
    %1267 = vmatprep.subr.bf16.mxu0 %v983
    %1268 = vmatpush1.bf16.msra.mxu0 %v982
    %1269 = vmatprep.subr.bf16.mxu0 %v979
    %1270 = vmatpush1.bf16.msra.mxu0 %v978
    %1271 = vmatprep.subr.bf16.mxu0 %v975
    %1272 = vmatpush1.bf16.msra.mxu0 %v974
    %1273 = vmatprep.subr.bf16.mxu0 %v971
    %1274 = vmatpush1.bf16.msra.mxu0 %v970
    %1275 = vmatprep.subr.bf16.mxu0 %v967
    %1276 = vmatpush1.bf16.msra.mxu0 %v966
    %1277 = vmatprep.subr.bf16.mxu0 %v963
    %1278 = vmatpush1.bf16.msra.mxu0 %v962
    %1279 = vmatprep.subr.bf16.mxu0 %v959
    %1280 = vmatpush1.bf16.msra.mxu0 %v958
    %1281 = vmatprep.subr.bf16.mxu0 %v955
    %1282 = vmatpush1.bf16.msra.mxu0 %v954
    %1283 = vmatprep.subr.bf16.mxu0 %v1015
    %1284 = vmatpush2.bf16.msra.mxu0 %v1014
    %1285 = vmatprep.subr.bf16.mxu0 %v1011
    %1286 = vmatpush2.bf16.msra.mxu0 %v1010
    %1287 = vmatprep.subr.bf16.mxu0 %v1007
    %1288 = vmatpush2.bf16.msra.mxu0 %v1006
    %1289 = vmatprep.subr.bf16.mxu0 %v1003
    %1290 = vmatpush2.bf16.msra.mxu0 %v1002
    %1291 = vmatprep.subr.bf16.mxu0 %v999
    %1292 = vmatpush2.bf16.msra.mxu0 %v998
    %1293 = vmatprep.subr.bf16.mxu0 %v995
    %1294 = vmatpush2.bf16.msra.mxu0 %v994
    %1295 = vmatprep.subr.bf16.mxu0 %v991
    %1296 = vmatpush2.bf16.msra.mxu0 %v990
    %1297 = vmatprep.subr.bf16.mxu0 %v987
    %1298 = vmatpush2.bf16.msra.mxu0 %v986
    %1299 = vmatprep.mubr.bf16.mxu0 %v353
    %1300 = vmatmul.mubr.bf16.gmra.mxu0 %v352
    %v1301 = vpop.f32.mrf.mxu0
    %v1302 = vadd.f32 %v1261, %v1301
    %v1303 = vpop.f32.mrf.mxu0
    %v1304 = vadd.f32 %v1263, %v1303
    %v1305 = vpop.f32.mrf.mxu0
    %v1306 = vpop.f32.mrf.mxu0
    %1307 = vdwg.mxu0
    %v1308 = vmax.f32 %v1220, 0.0
    %v1309 = vmax.f32 %v1222, 0.0
    %v1310 = vmax.f32 %v1302, 0.0
    %v1311 = vmax.f32 %v1304, 0.0
    %v1312 = vpack.c.bf16 %v1308, %v1308
    %v1313 = vpack.c.bf16 %v1309, %v1309
    %v1314 = vpack.c.bf16 %v1310, %v1310
    %v1315 = vpack.c.bf16 %v1311, %v1311
    %v1316 = vld [vmem:[%s5] sm:$0xff]
    %v1317 = vld [vmem:[%s5 + $0x8] sm:$0xff]
    %v1318 = vld [vmem:[%s5 + $0x10] sm:$0xff]
    %v1319 = vld [vmem:[%s5 + $0x18] sm:$0xff]
    %v1320 = vld [vmem:[%s5 + $0x20] sm:$0xff]
    %v1321 = vld [vmem:[%s5 + $0x28] sm:$0xff]
    %v1322 = vld [vmem:[%s5 + $0x30] sm:$0xff]
    %v1323 = vld [vmem:[%s5 + $0x38] sm:$0xff]
    %v1324 = vld [vmem:[%s5 + $0x40] sm:$0xff]
    %v1325 = vld [vmem:[%s5 + $0x48] sm:$0xff]
    %v1326 = vld [vmem:[%s5 + $0x50] sm:$0xff]
    %v1327 = vld [vmem:[%s5 + $0x58] sm:$0xff]
    %v1328 = vld [vmem:[%s5 + $0x60] sm:$0xff]
    %v1329 = vld [vmem:[%s5 + $0x68] sm:$0xff]
    %v1330 = vld [vmem:[%s5 + $0x70] sm:$0xff]
    %v1331 = vld [vmem:[%s5 + $0x78] sm:$0xff]
    %v1332 = vld [vmem:[%s5 + $0x80] sm:$0xff]
    %v1333 = vld [vmem:[%s5 + $0x88] sm:$0xff]
    %v1334 = vld [vmem:[%s5 + $0x90] sm:$0xff]
    %v1335 = vld [vmem:[%s5 + $0x98] sm:$0xff]
    %v1336 = vld [vmem:[%s5 + $0xa0] sm:$0xff]
    %v1337 = vld [vmem:[%s5 + $0xa8] sm:$0xff]
    %v1338 = vld [vmem:[%s5 + $0xb0] sm:$0xff]
    %v1339 = vld [vmem:[%s5 + $0xb8] sm:$0xff]
    %v1340 = vld [vmem:[%s5 + $0xc0] sm:$0xff]
    %v1341 = vld [vmem:[%s5 + $0xc8] sm:$0xff]
    %v1342 = vld [vmem:[%s5 + $0xd0] sm:$0xff]
    %v1343 = vld [vmem:[%s5 + $0xd8] sm:$0xff]
    %v1344 = vld [vmem:[%s5 + $0xe0] sm:$0xff]
    %v1345 = vld [vmem:[%s5 + $0xe8] sm:$0xff]
    %v1346 = vld [vmem:[%s5 + $0xf0] sm:$0xff]
    %v1347 = vld [vmem:[%s5 + $0xf8] sm:$0xff]
    %v1348 = vld [vmem:[%s5 + $0x100] sm:$0xff]
    %v1349 = vld [vmem:[%s5 + $0x108] sm:$0xff]
    %v1350 = vld [vmem:[%s5 + $0x110] sm:$0xff]
    %v1351 = vld [vmem:[%s5 + $0x118] sm:$0xff]
    %v1352 = vld [vmem:[%s5 + $0x120] sm:$0xff]
    %v1353 = vld [vmem:[%s5 + $0x128] sm:$0xff]
    %v1354 = vld [vmem:[%s5 + $0x130] sm:$0xff]
    %v1355 = vld [vmem:[%s5 + $0x138] sm:$0xff]
    %v1356 = vld [vmem:[%s5 + $0x140] sm:$0xff]
    %v1357 = vld [vmem:[%s5 + $0x148] sm:$0xff]
    %v1358 = vld [vmem:[%s5 + $0x150] sm:$0xff]
    %v1359 = vld [vmem:[%s5 + $0x158] sm:$0xff]
    %v1360 = vld [vmem:[%s5 + $0x160] sm:$0xff]
    %v1361 = vld [vmem:[%s5 + $0x168] sm:$0xff]
    %v1362 = vld [vmem:[%s5 + $0x170] sm:$0xff]
    %v1363 = vld [vmem:[%s5 + $0x178] sm:$0xff]
    %v1364 = vld [vmem:[%s5 + $0x180] sm:$0xff]
    %v1365 = vld [vmem:[%s5 + $0x188] sm:$0xff]
    %v1366 = vld [vmem:[%s5 + $0x190] sm:$0xff]
    %v1367 = vld [vmem:[%s5 + $0x198] sm:$0xff]
    %v1368 = vld [vmem:[%s5 + $0x1a0] sm:$0xff]
    %v1369 = vld [vmem:[%s5 + $0x1a8] sm:$0xff]
    %v1370 = vld [vmem:[%s5 + $0x1b0] sm:$0xff]
    %v1371 = vld [vmem:[%s5 + $0x1b8] sm:$0xff]
    %v1372 = vld [vmem:[%s5 + $0x1c0] sm:$0xff]
    %v1373 = vld [vmem:[%s5 + $0x1c8] sm:$0xff]
    %v1374 = vld [vmem:[%s5 + $0x1d0] sm:$0xff]
    %v1375 = vld [vmem:[%s5 + $0x1d8] sm:$0xff]
    %v1376 = vld [vmem:[%s5 + $0x1e0] sm:$0xff]
    %v1377 = vld [vmem:[%s5 + $0x1e8] sm:$0xff]
    %v1378 = vld [vmem:[%s5 + $0x1f0] sm:$0xff]
    %v1379 = vld [vmem:[%s5 + $0x1f8] sm:$0xff]
    %v1380 = vld [vmem:[%s5 + $0x200] sm:$0xff]
    %v1381 = vld [vmem:[%s5 + $0x208] sm:$0xff]
    %v1382 = vld [vmem:[%s5 + $0x210] sm:$0xff]
    %v1383 = vld [vmem:[%s5 + $0x218] sm:$0xff]
    %v1384 = vld [vmem:[%s5 + $0x220] sm:$0xff]
    %v1385 = vld [vmem:[%s5 + $0x228] sm:$0xff]
    %v1386 = vld [vmem:[%s5 + $0x230] sm:$0xff]
    %v1387 = vld [vmem:[%s5 + $0x238] sm:$0xff]
    %v1388 = vld [vmem:[%s5 + $0x240] sm:$0xff]
    %v1389 = vld [vmem:[%s5 + $0x248] sm:$0xff]
    %v1390 = vld [vmem:[%s5 + $0x250] sm:$0xff]
    %v1391 = vld [vmem:[%s5 + $0x258] sm:$0xff]
    %v1392 = vld [vmem:[%s5 + $0x260] sm:$0xff]
    %v1393 = vld [vmem:[%s5 + $0x268] sm:$0xff]
    %v1394 = vld [vmem:[%s5 + $0x270] sm:$0xff]
    %v1395 = vld [vmem:[%s5 + $0x278] sm:$0xff]
    %v1396 = vld [vmem:[%s5 + $0x280] sm:$0xff]
    %v1397 = vld [vmem:[%s5 + $0x288] sm:$0xff]
    %v1398 = vld [vmem:[%s5 + $0x290] sm:$0xff]
    %v1399 = vld [vmem:[%s5 + $0x298] sm:$0xff]
    %v1400 = vld [vmem:[%s5 + $0x2a0] sm:$0xff]
    %v1401 = vld [vmem:[%s5 + $0x2a8] sm:$0xff]
    %v1402 = vld [vmem:[%s5 + $0x2b0] sm:$0xff]
    %v1403 = vld [vmem:[%s5 + $0x2b8] sm:$0xff]
    %v1404 = vld [vmem:[%s5 + $0x2c0] sm:$0xff]
    %v1405 = vld [vmem:[%s5 + $0x2c8] sm:$0xff]
    %v1406 = vld [vmem:[%s5 + $0x2d0] sm:$0xff]
    %v1407 = vld [vmem:[%s5 + $0x2d8] sm:$0xff]
    %v1408 = vld [vmem:[%s5 + $0x2e0] sm:$0xff]
    %v1409 = vld [vmem:[%s5 + $0x2e8] sm:$0xff]
    %v1410 = vld [vmem:[%s5 + $0x2f0] sm:$0xff]
    %v1411 = vld [vmem:[%s5 + $0x2f8] sm:$0xff]
    %v1412 = vld [vmem:[%s5 + $0x300] sm:$0xff]
    %v1413 = vld [vmem:[%s5 + $0x308] sm:$0xff]
    %v1414 = vld [vmem:[%s5 + $0x310] sm:$0xff]
    %v1415 = vld [vmem:[%s5 + $0x318] sm:$0xff]
    %v1416 = vld [vmem:[%s5 + $0x320] sm:$0xff]
    %v1417 = vld [vmem:[%s5 + $0x328] sm:$0xff]
    %v1418 = vld [vmem:[%s5 + $0x330] sm:$0xff]
    %v1419 = vld [vmem:[%s5 + $0x338] sm:$0xff]
    %v1420 = vld [vmem:[%s5 + $0x340] sm:$0xff]
    %v1421 = vld [vmem:[%s5 + $0x348] sm:$0xff]
    %v1422 = vld [vmem:[%s5 + $0x350] sm:$0xff]
    %v1423 = vld [vmem:[%s5 + $0x358] sm:$0xff]
    %v1424 = vld [vmem:[%s5 + $0x360] sm:$0xff]
    %v1425 = vld [vmem:[%s5 + $0x368] sm:$0xff]
    %v1426 = vld [vmem:[%s5 + $0x370] sm:$0xff]
    %v1427 = vld [vmem:[%s5 + $0x378] sm:$0xff]
    %v1428 = vld [vmem:[%s5 + $0x380] sm:$0xff]
    %v1429 = vld [vmem:[%s5 + $0x388] sm:$0xff]
    %v1430 = vld [vmem:[%s5 + $0x390] sm:$0xff]
    %v1431 = vld [vmem:[%s5 + $0x398] sm:$0xff]
    %v1432 = vld [vmem:[%s5 + $0x3a0] sm:$0xff]
    %v1433 = vld [vmem:[%s5 + $0x3a8] sm:$0xff]
    %v1434 = vld [vmem:[%s5 + $0x3b0] sm:$0xff]
    %v1435 = vld [vmem:[%s5 + $0x3b8] sm:$0xff]
    %v1436 = vld [vmem:[%s5 + $0x3c0] sm:$0xff]
    %v1437 = vld [vmem:[%s5 + $0x3c8] sm:$0xff]
    %v1438 = vld [vmem:[%s5 + $0x3d0] sm:$0xff]
    %v1439 = vld [vmem:[%s5 + $0x3d8] sm:$0xff]
    %v1440 = vld [vmem:[%s5 + $0x3e0] sm:$0xff]
    %v1441 = vld [vmem:[%s5 + $0x3e8] sm:$0xff]
    %v1442 = vld [vmem:[%s5 + $0x3f0] sm:$0xff]
    %v1443 = vld [vmem:[%s5 + $0x3f8] sm:$0xff]
    %v1444 = vld [vmem:[%s6] sm:$0xf]
    %v1446 = vlaneseq
    %v1447 = vshrl.u32 %v1446, 7
    %v1448 = vsub.s32 0, %v1447
    %v1449 = vrot.slane %v1444, %v1448
    %v1450 = vlaneseq
    %v1451 = vshrl.u32 %v1450, 7
    %v1452 = vsub.s32 1, %v1451
    %v1453 = vrot.slane %v1444, %v1452
    %v1454 = vlaneseq
    %v1455 = vshrl.u32 %v1454, 7
    %v1456 = vsub.s32 2, %v1455
    %v1457 = vrot.slane %v1444, %v1456
    %v1458 = vlaneseq
    %v1459 = vshrl.u32 %v1458, 7
    %v1460 = vsub.s32 3, %v1459
    %v1461 = vrot.slane %v1444, %v1460
    %v1594 = vunpack.c.l.b16 %v1316
    %v1595 = vunpack.c.h.b16 %v1316
    %v1596 = vunpack.c.l.b16 %v1317
    %v1597 = vunpack.c.h.b16 %v1317
    %v1598 = vunpack.c.l.b16 %v1318
    %v1599 = vunpack.c.h.b16 %v1318
    %v1600 = vunpack.c.l.b16 %v1319
    %v1601 = vunpack.c.h.b16 %v1319
    %v1602 = vunpack.c.l.b16 %v1320
    %v1603 = vunpack.c.h.b16 %v1320
    %v1604 = vunpack.c.l.b16 %v1321
    %v1605 = vunpack.c.h.b16 %v1321
    %v1606 = vunpack.c.l.b16 %v1322
    %v1607 = vunpack.c.h.b16 %v1322
    %v1608 = vunpack.c.l.b16 %v1323
    %v1609 = vunpack.c.h.b16 %v1323
    %v1610 = vunpack.c.l.b16 %v1324
    %v1611 = vunpack.c.h.b16 %v1324
    %v1612 = vunpack.c.l.b16 %v1325
    %v1613 = vunpack.c.h.b16 %v1325
    %v1614 = vunpack.c.l.b16 %v1326
    %v1615 = vunpack.c.h.b16 %v1326
    %v1616 = vunpack.c.l.b16 %v1327
    %v1617 = vunpack.c.h.b16 %v1327
    %v1618 = vunpack.c.l.b16 %v1328
    %v1619 = vunpack.c.h.b16 %v1328
    %v1620 = vunpack.c.l.b16 %v1329
    %v1621 = vunpack.c.h.b16 %v1329
    %v1622 = vunpack.c.l.b16 %v1330
    %v1623 = vunpack.c.h.b16 %v1330
    %v1624 = vunpack.c.l.b16 %v1331
    %v1625 = vunpack.c.h.b16 %v1331
    %v1626 = vunpack.c.l.b16 %v1332
    %v1627 = vunpack.c.h.b16 %v1332
    %v1628 = vunpack.c.l.b16 %v1333
    %v1629 = vunpack.c.h.b16 %v1333
    %v1630 = vunpack.c.l.b16 %v1334
    %v1631 = vunpack.c.h.b16 %v1334
    %v1632 = vunpack.c.l.b16 %v1335
    %v1633 = vunpack.c.h.b16 %v1335
    %v1634 = vunpack.c.l.b16 %v1336
    %v1635 = vunpack.c.h.b16 %v1336
    %v1636 = vunpack.c.l.b16 %v1337
    %v1637 = vunpack.c.h.b16 %v1337
    %v1638 = vunpack.c.l.b16 %v1338
    %v1639 = vunpack.c.h.b16 %v1338
    %v1640 = vunpack.c.l.b16 %v1339
    %v1641 = vunpack.c.h.b16 %v1339
    %v1642 = vunpack.c.l.b16 %v1340
    %v1643 = vunpack.c.h.b16 %v1340
    %v1644 = vunpack.c.l.b16 %v1341
    %v1645 = vunpack.c.h.b16 %v1341
    %v1646 = vunpack.c.l.b16 %v1342
    %v1647 = vunpack.c.h.b16 %v1342
    %v1648 = vunpack.c.l.b16 %v1343
    %v1649 = vunpack.c.h.b16 %v1343
    %v1650 = vunpack.c.l.b16 %v1344
    %v1651 = vunpack.c.h.b16 %v1344
    %v1652 = vunpack.c.l.b16 %v1345
    %v1653 = vunpack.c.h.b16 %v1345
    %v1654 = vunpack.c.l.b16 %v1346
    %v1655 = vunpack.c.h.b16 %v1346
    %v1656 = vunpack.c.l.b16 %v1347
    %v1657 = vunpack.c.h.b16 %v1347
    %v1658 = vunpack.c.l.b16 %v1348
    %v1659 = vunpack.c.h.b16 %v1348
    %v1660 = vunpack.c.l.b16 %v1349
    %v1661 = vunpack.c.h.b16 %v1349
    %v1662 = vunpack.c.l.b16 %v1350
    %v1663 = vunpack.c.h.b16 %v1350
    %v1664 = vunpack.c.l.b16 %v1351
    %v1665 = vunpack.c.h.b16 %v1351
    %v1666 = vunpack.c.l.b16 %v1352
    %v1667 = vunpack.c.h.b16 %v1352
    %v1668 = vunpack.c.l.b16 %v1353
    %v1669 = vunpack.c.h.b16 %v1353
    %v1670 = vunpack.c.l.b16 %v1354
    %v1671 = vunpack.c.h.b16 %v1354
    %v1672 = vunpack.c.l.b16 %v1355
    %v1673 = vunpack.c.h.b16 %v1355
    %v1674 = vunpack.c.l.b16 %v1356
    %v1675 = vunpack.c.h.b16 %v1356
    %v1676 = vunpack.c.l.b16 %v1357
    %v1677 = vunpack.c.h.b16 %v1357
    %v1678 = vunpack.c.l.b16 %v1358
    %v1679 = vunpack.c.h.b16 %v1358
    %v1680 = vunpack.c.l.b16 %v1359
    %v1681 = vunpack.c.h.b16 %v1359
    %v1682 = vunpack.c.l.b16 %v1360
    %v1683 = vunpack.c.h.b16 %v1360
    %v1684 = vunpack.c.l.b16 %v1361
    %v1685 = vunpack.c.h.b16 %v1361
    %v1686 = vunpack.c.l.b16 %v1362
    %v1687 = vunpack.c.h.b16 %v1362
    %v1688 = vunpack.c.l.b16 %v1363
    %v1689 = vunpack.c.h.b16 %v1363
    %v1690 = vunpack.c.l.b16 %v1364
    %v1691 = vunpack.c.h.b16 %v1364
    %v1692 = vunpack.c.l.b16 %v1365
    %v1693 = vunpack.c.h.b16 %v1365
    %v1694 = vunpack.c.l.b16 %v1366
    %v1695 = vunpack.c.h.b16 %v1366
    %v1696 = vunpack.c.l.b16 %v1367
    %v1697 = vunpack.c.h.b16 %v1367
    %v1698 = vunpack.c.l.b16 %v1368
    %v1699 = vunpack.c.h.b16 %v1368
    %v1700 = vunpack.c.l.b16 %v1369
    %v1701 = vunpack.c.h.b16 %v1369
    %v1702 = vunpack.c.l.b16 %v1370
    %v1703 = vunpack.c.h.b16 %v1370
    %v1704 = vunpack.c.l.b16 %v1371
    %v1705 = vunpack.c.h.b16 %v1371
    %v1706 = vunpack.c.l.b16 %v1372
    %v1707 = vunpack.c.h.b16 %v1372
    %v1708 = vunpack.c.l.b16 %v1373
    %v1709 = vunpack.c.h.b16 %v1373
    %v1710 = vunpack.c.l.b16 %v1374
    %v1711 = vunpack.c.h.b16 %v1374
    %v1712 = vunpack.c.l.b16 %v1375
    %v1713 = vunpack.c.h.b16 %v1375
    %v1714 = vunpack.c.l.b16 %v1376
    %v1715 = vunpack.c.h.b16 %v1376
    %v1716 = vunpack.c.l.b16 %v1377
    %v1717 = vunpack.c.h.b16 %v1377
    %v1718 = vunpack.c.l.b16 %v1378
    %v1719 = vunpack.c.h.b16 %v1378
    %v1720 = vunpack.c.l.b16 %v1379
    %v1721 = vunpack.c.h.b16 %v1379
    %v1722 = vunpack.c.l.b16 %v1380
    %v1723 = vunpack.c.h.b16 %v1380
    %v1724 = vunpack.c.l.b16 %v1381
    %v1725 = vunpack.c.h.b16 %v1381
    %v1726 = vunpack.c.l.b16 %v1382
    %v1727 = vunpack.c.h.b16 %v1382
    %v1728 = vunpack.c.l.b16 %v1383
    %v1729 = vunpack.c.h.b16 %v1383
    %v1730 = vunpack.c.l.b16 %v1384
    %v1731 = vunpack.c.h.b16 %v1384
    %v1732 = vunpack.c.l.b16 %v1385
    %v1733 = vunpack.c.h.b16 %v1385
    %v1734 = vunpack.c.l.b16 %v1386
    %v1735 = vunpack.c.h.b16 %v1386
    %v1736 = vunpack.c.l.b16 %v1387
    %v1737 = vunpack.c.h.b16 %v1387
    %v1738 = vunpack.c.l.b16 %v1388
    %v1739 = vunpack.c.h.b16 %v1388
    %v1740 = vunpack.c.l.b16 %v1389
    %v1741 = vunpack.c.h.b16 %v1389
    %v1742 = vunpack.c.l.b16 %v1390
    %v1743 = vunpack.c.h.b16 %v1390
    %v1744 = vunpack.c.l.b16 %v1391
    %v1745 = vunpack.c.h.b16 %v1391
    %v1746 = vunpack.c.l.b16 %v1392
    %v1747 = vunpack.c.h.b16 %v1392
    %v1748 = vunpack.c.l.b16 %v1393
    %v1749 = vunpack.c.h.b16 %v1393
    %v1750 = vunpack.c.l.b16 %v1394
    %v1751 = vunpack.c.h.b16 %v1394
    %v1752 = vunpack.c.l.b16 %v1395
    %v1753 = vunpack.c.h.b16 %v1395
    %v1754 = vunpack.c.l.b16 %v1396
    %v1755 = vunpack.c.h.b16 %v1396
    %v1756 = vunpack.c.l.b16 %v1397
    %v1757 = vunpack.c.h.b16 %v1397
    %v1758 = vunpack.c.l.b16 %v1398
    %v1759 = vunpack.c.h.b16 %v1398
    %v1760 = vunpack.c.l.b16 %v1399
    %v1761 = vunpack.c.h.b16 %v1399
    %v1762 = vunpack.c.l.b16 %v1400
    %v1763 = vunpack.c.h.b16 %v1400
    %v1764 = vunpack.c.l.b16 %v1401
    %v1765 = vunpack.c.h.b16 %v1401
    %v1766 = vunpack.c.l.b16 %v1402
    %v1767 = vunpack.c.h.b16 %v1402
    %v1768 = vunpack.c.l.b16 %v1403
    %v1769 = vunpack.c.h.b16 %v1403
    %v1770 = vunpack.c.l.b16 %v1404
    %v1771 = vunpack.c.h.b16 %v1404
    %v1772 = vunpack.c.l.b16 %v1405
    %v1773 = vunpack.c.h.b16 %v1405
    %v1774 = vunpack.c.l.b16 %v1406
    %v1775 = vunpack.c.h.b16 %v1406
    %v1776 = vunpack.c.l.b16 %v1407
    %v1777 = vunpack.c.h.b16 %v1407
    %v1778 = vunpack.c.l.b16 %v1408
    %v1779 = vunpack.c.h.b16 %v1408
    %v1780 = vunpack.c.l.b16 %v1409
    %v1781 = vunpack.c.h.b16 %v1409
    %v1782 = vunpack.c.l.b16 %v1410
    %v1783 = vunpack.c.h.b16 %v1410
    %v1784 = vunpack.c.l.b16 %v1411
    %v1785 = vunpack.c.h.b16 %v1411
    %v1786 = vunpack.c.l.b16 %v1412
    %v1787 = vunpack.c.h.b16 %v1412
    %v1788 = vunpack.c.l.b16 %v1413
    %v1789 = vunpack.c.h.b16 %v1413
    %v1790 = vunpack.c.l.b16 %v1414
    %v1791 = vunpack.c.h.b16 %v1414
    %v1792 = vunpack.c.l.b16 %v1415
    %v1793 = vunpack.c.h.b16 %v1415
    %v1794 = vunpack.c.l.b16 %v1416
    %v1795 = vunpack.c.h.b16 %v1416
    %v1796 = vunpack.c.l.b16 %v1417
    %v1797 = vunpack.c.h.b16 %v1417
    %v1798 = vunpack.c.l.b16 %v1418
    %v1799 = vunpack.c.h.b16 %v1418
    %v1800 = vunpack.c.l.b16 %v1419
    %v1801 = vunpack.c.h.b16 %v1419
    %v1802 = vunpack.c.l.b16 %v1420
    %v1803 = vunpack.c.h.b16 %v1420
    %v1804 = vunpack.c.l.b16 %v1421
    %v1805 = vunpack.c.h.b16 %v1421
    %v1806 = vunpack.c.l.b16 %v1422
    %v1807 = vunpack.c.h.b16 %v1422
    %v1808 = vunpack.c.l.b16 %v1423
    %v1809 = vunpack.c.h.b16 %v1423
    %v1810 = vunpack.c.l.b16 %v1424
    %v1811 = vunpack.c.h.b16 %v1424
    %v1812 = vunpack.c.l.b16 %v1425
    %v1813 = vunpack.c.h.b16 %v1425
    %v1814 = vunpack.c.l.b16 %v1426
    %v1815 = vunpack.c.h.b16 %v1426
    %v1816 = vunpack.c.l.b16 %v1427
    %v1817 = vunpack.c.h.b16 %v1427
    %v1818 = vunpack.c.l.b16 %v1428
    %v1819 = vunpack.c.h.b16 %v1428
    %v1820 = vunpack.c.l.b16 %v1429
    %v1821 = vunpack.c.h.b16 %v1429
    %v1822 = vunpack.c.l.b16 %v1430
    %v1823 = vunpack.c.h.b16 %v1430
    %v1824 = vunpack.c.l.b16 %v1431
    %v1825 = vunpack.c.h.b16 %v1431
    %v1826 = vunpack.c.l.b16 %v1432
    %v1827 = vunpack.c.h.b16 %v1432
    %v1828 = vunpack.c.l.b16 %v1433
    %v1829 = vunpack.c.h.b16 %v1433
    %v1830 = vunpack.c.l.b16 %v1434
    %v1831 = vunpack.c.h.b16 %v1434
    %v1832 = vunpack.c.l.b16 %v1435
    %v1833 = vunpack.c.h.b16 %v1435
    %v1834 = vunpack.c.l.b16 %v1436
    %v1835 = vunpack.c.h.b16 %v1436
    %v1836 = vunpack.c.l.b16 %v1437
    %v1837 = vunpack.c.h.b16 %v1437
    %v1838 = vunpack.c.l.b16 %v1438
    %v1839 = vunpack.c.h.b16 %v1438
    %v1840 = vunpack.c.l.b16 %v1439
    %v1841 = vunpack.c.h.b16 %v1439
    %v1842 = vunpack.c.l.b16 %v1440
    %v1843 = vunpack.c.h.b16 %v1440
    %v1844 = vunpack.c.l.b16 %v1441
    %v1845 = vunpack.c.h.b16 %v1441
    %v1846 = vunpack.c.l.b16 %v1442
    %v1847 = vunpack.c.h.b16 %v1442
    %v1848 = vunpack.c.l.b16 %v1443
    %v1849 = vunpack.c.h.b16 %v1443
    %v1850 = vpack.c.b16 %v1598, %v1594
    %v1851 = vpack.c.b16 %v1599, %v1595
    %v1852 = vpack.c.b16 %v1600, %v1596
    %v1853 = vpack.c.b16 %v1601, %v1597
    %v1854 = vpack.c.b16 %v1606, %v1602
    %v1855 = vpack.c.b16 %v1607, %v1603
    %v1856 = vpack.c.b16 %v1608, %v1604
    %v1857 = vpack.c.b16 %v1609, %v1605
    %v1858 = vpack.c.b16 %v1614, %v1610
    %v1859 = vpack.c.b16 %v1615, %v1611
    %v1860 = vpack.c.b16 %v1616, %v1612
    %v1861 = vpack.c.b16 %v1617, %v1613
    %v1862 = vpack.c.b16 %v1622, %v1618
    %v1863 = vpack.c.b16 %v1623, %v1619
    %v1864 = vpack.c.b16 %v1624, %v1620
    %v1865 = vpack.c.b16 %v1625, %v1621
    %v1866 = vpack.c.b16 %v1630, %v1626
    %v1867 = vpack.c.b16 %v1631, %v1627
    %v1868 = vpack.c.b16 %v1632, %v1628
    %v1869 = vpack.c.b16 %v1633, %v1629
    %v1870 = vpack.c.b16 %v1638, %v1634
    %v1871 = vpack.c.b16 %v1639, %v1635
    %v1872 = vpack.c.b16 %v1640, %v1636
    %v1873 = vpack.c.b16 %v1641, %v1637
    %v1874 = vpack.c.b16 %v1646, %v1642
    %v1875 = vpack.c.b16 %v1647, %v1643
    %v1876 = vpack.c.b16 %v1648, %v1644
    %v1877 = vpack.c.b16 %v1649, %v1645
    %v1878 = vpack.c.b16 %v1654, %v1650
    %v1879 = vpack.c.b16 %v1655, %v1651
    %v1880 = vpack.c.b16 %v1656, %v1652
    %v1881 = vpack.c.b16 %v1657, %v1653
    %v1882 = vpack.c.b16 %v1662, %v1658
    %v1883 = vpack.c.b16 %v1663, %v1659
    %v1884 = vpack.c.b16 %v1664, %v1660
    %v1885 = vpack.c.b16 %v1665, %v1661
    %v1886 = vpack.c.b16 %v1670, %v1666
    %v1887 = vpack.c.b16 %v1671, %v1667
    %v1888 = vpack.c.b16 %v1672, %v1668
    %v1889 = vpack.c.b16 %v1673, %v1669
    %v1890 = vpack.c.b16 %v1678, %v1674
    %v1891 = vpack.c.b16 %v1679, %v1675
    %v1892 = vpack.c.b16 %v1680, %v1676
    %v1893 = vpack.c.b16 %v1681, %v1677
    %v1894 = vpack.c.b16 %v1686, %v1682
    %v1895 = vpack.c.b16 %v1687, %v1683
    %v1896 = vpack.c.b16 %v1688, %v1684
    %v1897 = vpack.c.b16 %v1689, %v1685
    %v1898 = vpack.c.b16 %v1694, %v1690
    %v1899 = vpack.c.b16 %v1695, %v1691
    %v1900 = vpack.c.b16 %v1696, %v1692
    %v1901 = vpack.c.b16 %v1697, %v1693
    %v1902 = vpack.c.b16 %v1702, %v1698
    %v1903 = vpack.c.b16 %v1703, %v1699
    %v1904 = vpack.c.b16 %v1704, %v1700
    %v1905 = vpack.c.b16 %v1705, %v1701
    %v1906 = vpack.c.b16 %v1710, %v1706
    %v1907 = vpack.c.b16 %v1711, %v1707
    %v1908 = vpack.c.b16 %v1712, %v1708
    %v1909 = vpack.c.b16 %v1713, %v1709
    %v1910 = vpack.c.b16 %v1718, %v1714
    %v1911 = vpack.c.b16 %v1719, %v1715
    %v1912 = vpack.c.b16 %v1720, %v1716
    %v1913 = vpack.c.b16 %v1721, %v1717
    %v1914 = vpack.c.b16 %v1726, %v1722
    %v1915 = vpack.c.b16 %v1727, %v1723
    %v1916 = vpack.c.b16 %v1728, %v1724
    %v1917 = vpack.c.b16 %v1729, %v1725
    %v1918 = vpack.c.b16 %v1734, %v1730
    %v1919 = vpack.c.b16 %v1735, %v1731
    %v1920 = vpack.c.b16 %v1736, %v1732
    %v1921 = vpack.c.b16 %v1737, %v1733
    %v1922 = vpack.c.b16 %v1742, %v1738
    %v1923 = vpack.c.b16 %v1743, %v1739
    %v1924 = vpack.c.b16 %v1744, %v1740
    %v1925 = vpack.c.b16 %v1745, %v1741
    %v1926 = vpack.c.b16 %v1750, %v1746
    %v1927 = vpack.c.b16 %v1751, %v1747
    %v1928 = vpack.c.b16 %v1752, %v1748
    %v1929 = vpack.c.b16 %v1753, %v1749
    %v1930 = vpack.c.b16 %v1758, %v1754
    %v1931 = vpack.c.b16 %v1759, %v1755
    %v1932 = vpack.c.b16 %v1760, %v1756
    %v1933 = vpack.c.b16 %v1761, %v1757
    %v1934 = vpack.c.b16 %v1766, %v1762
    %v1935 = vpack.c.b16 %v1767, %v1763
    %v1936 = vpack.c.b16 %v1768, %v1764
    %v1937 = vpack.c.b16 %v1769, %v1765
    %v1938 = vpack.c.b16 %v1774, %v1770
    %v1939 = vpack.c.b16 %v1775, %v1771
    %v1940 = vpack.c.b16 %v1776, %v1772
    %v1941 = vpack.c.b16 %v1777, %v1773
    %v1942 = vpack.c.b16 %v1782, %v1778
    %v1943 = vpack.c.b16 %v1783, %v1779
    %v1944 = vpack.c.b16 %v1784, %v1780
    %v1945 = vpack.c.b16 %v1785, %v1781
    %v1946 = vpack.c.b16 %v1790, %v1786
    %v1947 = vpack.c.b16 %v1791, %v1787
    %v1948 = vpack.c.b16 %v1792, %v1788
    %v1949 = vpack.c.b16 %v1793, %v1789
    %v1950 = vpack.c.b16 %v1798, %v1794
    %v1951 = vpack.c.b16 %v1799, %v1795
    %v1952 = vpack.c.b16 %v1800, %v1796
    %v1953 = vpack.c.b16 %v1801, %v1797
    %v1954 = vpack.c.b16 %v1806, %v1802
    %v1955 = vpack.c.b16 %v1807, %v1803
    %v1956 = vpack.c.b16 %v1808, %v1804
    %v1957 = vpack.c.b16 %v1809, %v1805
    %v1958 = vpack.c.b16 %v1814, %v1810
    %v1959 = vpack.c.b16 %v1815, %v1811
    %v1960 = vpack.c.b16 %v1816, %v1812
    %v1961 = vpack.c.b16 %v1817, %v1813
    %v1962 = vpack.c.b16 %v1822, %v1818
    %v1963 = vpack.c.b16 %v1823, %v1819
    %v1964 = vpack.c.b16 %v1824, %v1820
    %v1965 = vpack.c.b16 %v1825, %v1821
    %v1966 = vpack.c.b16 %v1830, %v1826
    %v1967 = vpack.c.b16 %v1831, %v1827
    %v1968 = vpack.c.b16 %v1832, %v1828
    %v1969 = vpack.c.b16 %v1833, %v1829
    %v1970 = vpack.c.b16 %v1838, %v1834
    %v1971 = vpack.c.b16 %v1839, %v1835
    %v1972 = vpack.c.b16 %v1840, %v1836
    %v1973 = vpack.c.b16 %v1841, %v1837
    %v1974 = vpack.c.b16 %v1846, %v1842
    %v1975 = vpack.c.b16 %v1847, %v1843
    %v1976 = vpack.c.b16 %v1848, %v1844
    %v1977 = vpack.c.b16 %v1849, %v1845
    %2106 = vmatprep.subr.bf16.mxu0 %v1879
    %2107 = vmatpush1.bf16.msra.mxu0 %v1878
    %2108 = vmatprep.subr.bf16.mxu0 %v1875
    %2109 = vmatpush1.bf16.msra.mxu0 %v1874
    %2110 = vmatprep.subr.bf16.mxu0 %v1871
    %2111 = vmatpush1.bf16.msra.mxu0 %v1870
    %2112 = vmatprep.subr.bf16.mxu0 %v1867
    %2113 = vmatpush1.bf16.msra.mxu0 %v1866
    %2114 = vmatprep.subr.bf16.mxu0 %v1863
    %2115 = vmatpush1.bf16.msra.mxu0 %v1862
    %2116 = vmatprep.subr.bf16.mxu0 %v1859
    %2117 = vmatpush1.bf16.msra.mxu0 %v1858
    %2118 = vmatprep.subr.bf16.mxu0 %v1855
    %2119 = vmatpush1.bf16.msra.mxu0 %v1854
    %2120 = vmatprep.subr.bf16.mxu0 %v1851
    %2121 = vmatpush1.bf16.msra.mxu0 %v1850
    %2122 = vmatprep.subr.bf16.mxu0 %v1911
    %2123 = vmatpush2.bf16.msra.mxu0 %v1910
    %2124 = vmatprep.subr.bf16.mxu0 %v1907
    %2125 = vmatpush2.bf16.msra.mxu0 %v1906
    %2126 = vmatprep.subr.bf16.mxu0 %v1903
    %2127 = vmatpush2.bf16.msra.mxu0 %v1902
    %2128 = vmatprep.subr.bf16.mxu0 %v1899
    %2129 = vmatpush2.bf16.msra.mxu0 %v1898
    %2130 = vmatprep.subr.bf16.mxu0 %v1895
    %2131 = vmatpush2.bf16.msra.mxu0 %v1894
    %2132 = vmatprep.subr.bf16.mxu0 %v1891
    %2133 = vmatpush2.bf16.msra.mxu0 %v1890
    %2134 = vmatprep.subr.bf16.mxu0 %v1887
    %2135 = vmatpush2.bf16.msra.mxu0 %v1886
    %2136 = vmatprep.subr.bf16.mxu0 %v1883
    %2137 = vmatpush2.bf16.msra.mxu0 %v1882
    %2138 = vmatprep.mubr.bf16.mxu0 %v1313
    %2139 = vmatmul.mubr.bf16.gmra.mxu0 %v1312
    %v2140 = vpop.f32.mrf.mxu0
    %v2141 = vadd.f32 %v1449, %v2140
    %v2142 = vpop.f32.mrf.mxu0
    %v2143 = vadd.f32 %v1453, %v2142
    %v2144 = vpop.f32.mrf.mxu0
    %v2145 = vpop.f32.mrf.mxu0
    %2146 = vdwg.mxu0
    %2147 = vmatprep.subr.bf16.mxu0 %v1943
    %2148 = vmatpush1.bf16.msra.mxu0 %v1942
    %2149 = vmatprep.subr.bf16.mxu0 %v1939
    %2150 = vmatpush1.bf16.msra.mxu0 %v1938
    %2151 = vmatprep.subr.bf16.mxu0 %v1935
    %2152 = vmatpush1.bf16.msra.mxu0 %v1934
    %2153 = vmatprep.subr.bf16.mxu0 %v1931
    %2154 = vmatpush1.bf16.msra.mxu0 %v1930
    %2155 = vmatprep.subr.bf16.mxu0 %v1927
    %2156 = vmatpush1.bf16.msra.mxu0 %v1926
    %2157 = vmatprep.subr.bf16.mxu0 %v1923
    %2158 = vmatpush1.bf16.msra.mxu0 %v1922
    %2159 = vmatprep.subr.bf16.mxu0 %v1919
    %2160 = vmatpush1.bf16.msra.mxu0 %v1918
    %2161 = vmatprep.subr.bf16.mxu0 %v1915
    %2162 = vmatpush1.bf16.msra.mxu0 %v1914
    %2163 = vmatprep.subr.bf16.mxu0 %v1975
    %2164 = vmatpush2.bf16.msra.mxu0 %v1974
    %2165 = vmatprep.subr.bf16.mxu0 %v1971
    %2166 = vmatpush2.bf16.msra.mxu0 %v1970
    %2167 = vmatprep.subr.bf16.mxu0 %v1967
    %2168 = vmatpush2.bf16.msra.mxu0 %v1966
    %2169 = vmatprep.subr.bf16.mxu0 %v1963
    %2170 = vmatpush2.bf16.msra.mxu0 %v1962
    %2171 = vmatprep.subr.bf16.mxu0 %v1959
    %2172 = vmatpush2.bf16.msra.mxu0 %v1958
    %2173 = vmatprep.subr.bf16.mxu0 %v1955
    %2174 = vmatpush2.bf16.msra.mxu0 %v1954
    %2175 = vmatprep.subr.bf16.mxu0 %v1951
    %2176 = vmatpush2.bf16.msra.mxu0 %v1950
    %2177 = vmatprep.subr.bf16.mxu0 %v1947
    %2178 = vmatpush2.bf16.msra.mxu0 %v1946
    %2179 = vmatprep.mubr.bf16.mxu0 %v1315
    %2180 = vmatmul.mubr.bf16.gmra.mxu0 %v1314
    %v2181 = vpop.f32.mrf.mxu0
    %v2182 = vadd.f32 %v2141, %v2181
    %v2183 = vpop.f32.mrf.mxu0
    %v2184 = vadd.f32 %v2143, %v2183
    %v2185 = vpop.f32.mrf.mxu0
    %v2186 = vpop.f32.mrf.mxu0
    %2187 = vdwg.mxu0
    %2188 = vmatprep.subr.bf16.mxu0 %v1881
    %2189 = vmatpush1.bf16.msra.mxu0 %v1880
    %2190 = vmatprep.subr.bf16.mxu0 %v1877
    %2191 = vmatpush1.bf16.msra.mxu0 %v1876
    %2192 = vmatprep.subr.bf16.mxu0 %v1873
    %2193 = vmatpush1.bf16.msra.mxu0 %v1872
    %2194 = vmatprep.subr.bf16.mxu0 %v1869
    %2195 = vmatpush1.bf16.msra.mxu0 %v1868
    %2196 = vmatprep.subr.bf16.mxu0 %v1865
    %2197 = vmatpush1.bf16.msra.mxu0 %v1864
    %2198 = vmatprep.subr.bf16.mxu0 %v1861
    %2199 = vmatpush1.bf16.msra.mxu0 %v1860
    %2200 = vmatprep.subr.bf16.mxu0 %v1857
    %2201 = vmatpush1.bf16.msra.mxu0 %v1856
    %2202 = vmatprep.subr.bf16.mxu0 %v1853
    %2203 = vmatpush1.bf16.msra.mxu0 %v1852
    %2204 = vmatprep.subr.bf16.mxu0 %v1913
    %2205 = vmatpush2.bf16.msra.mxu0 %v1912
    %2206 = vmatprep.subr.bf16.mxu0 %v1909
    %2207 = vmatpush2.bf16.msra.mxu0 %v1908
    %2208 = vmatprep.subr.bf16.mxu0 %v1905
    %2209 = vmatpush2.bf16.msra.mxu0 %v1904
    %2210 = vmatprep.subr.bf16.mxu0 %v1901
    %2211 = vmatpush2.bf16.msra.mxu0 %v1900
    %2212 = vmatprep.subr.bf16.mxu0 %v1897
    %2213 = vmatpush2.bf16.msra.mxu0 %v1896
    %2214 = vmatprep.subr.bf16.mxu0 %v1893
    %2215 = vmatpush2.bf16.msra.mxu0 %v1892
    %2216 = vmatprep.subr.bf16.mxu0 %v1889
    %2217 = vmatpush2.bf16.msra.mxu0 %v1888
    %2218 = vmatprep.subr.bf16.mxu0 %v1885
    %2219 = vmatpush2.bf16.msra.mxu0 %v1884
    %2220 = vmatprep.mubr.bf16.mxu0 %v1313
    %2221 = vmatmul.mubr.bf16.gmra.mxu0 %v1312
    %v2222 = vpop.f32.mrf.mxu0
    %v2223 = vadd.f32 %v1457, %v2222
    %v2224 = vpop.f32.mrf.mxu0
    %v2225 = vadd.f32 %v1461, %v2224
    %v2226 = vpop.f32.mrf.mxu0
    %v2227 = vpop.f32.mrf.mxu0
    %2228 = vdwg.mxu0
    %2229 = vmatprep.subr.bf16.mxu0 %v1945
    %2230 = vmatpush1.bf16.msra.mxu0 %v1944
    %2231 = vmatprep.subr.bf16.mxu0 %v1941
    %2232 = vmatpush1.bf16.msra.mxu0 %v1940
    %2233 = vmatprep.subr.bf16.mxu0 %v1937
    %2234 = vmatpush1.bf16.msra.mxu0 %v1936
    %2235 = vmatprep.subr.bf16.mxu0 %v1933
    %2236 = vmatpush1.bf16.msra.mxu0 %v1932
    %2237 = vmatprep.subr.bf16.mxu0 %v1929
    %2238 = vmatpush1.bf16.msra.mxu0 %v1928
    %2239 = vmatprep.subr.bf16.mxu0 %v1925
    %2240 = vmatpush1.bf16.msra.mxu0 %v1924
    %2241 = vmatprep.subr.bf16.mxu0 %v1921
    %2242 = vmatpush1.bf16.msra.mxu0 %v1920
    %2243 = vmatprep.subr.bf16.mxu0 %v1917
    %2244 = vmatpush1.bf16.msra.mxu0 %v1916
    %2245 = vmatprep.subr.bf16.mxu0 %v1977
    %2246 = vmatpush2.bf16.msra.mxu0 %v1976
    %2247 = vmatprep.subr.bf16.mxu0 %v1973
    %2248 = vmatpush2.bf16.msra.mxu0 %v1972
    %2249 = vmatprep.subr.bf16.mxu0 %v1969
    %2250 = vmatpush2.bf16.msra.mxu0 %v1968
    %2251 = vmatprep.subr.bf16.mxu0 %v1965
    %2252 = vmatpush2.bf16.msra.mxu0 %v1964
    %2253 = vmatprep.subr.bf16.mxu0 %v1961
    %2254 = vmatpush2.bf16.msra.mxu0 %v1960
    %2255 = vmatprep.subr.bf16.mxu0 %v1957
    %2256 = vmatpush2.bf16.msra.mxu0 %v1956
    %2257 = vmatprep.subr.bf16.mxu0 %v1953
    %2258 = vmatpush2.bf16.msra.mxu0 %v1952
    %2259 = vmatprep.subr.bf16.mxu0 %v1949
    %2260 = vmatpush2.bf16.msra.mxu0 %v1948
    %2261 = vmatprep.mubr.bf16.mxu0 %v1315
    %2262 = vmatmul.mubr.bf16.gmra.mxu0 %v1314
    %v2263 = vpop.f32.mrf.mxu0
    %v2264 = vadd.f32 %v2223, %v2263
    %v2265 = vpop.f32.mrf.mxu0
    %v2266 = vadd.f32 %v2225, %v2265
    %v2267 = vpop.f32.mrf.mxu0
    %v2268 = vpop.f32.mrf.mxu0
    %2269 = vdwg.mxu0
    %v2270 = vpack.c.bf16 %v2182, %v2182
    %v2271 = vpack.c.bf16 %v2184, %v2184
    %v2272 = vpack.c.bf16 %v2264, %v2264
    %v2273 = vpack.c.bf16 %v2266, %v2266
    %v2274 = vld [vmem:[%s7] sm:$0xf]
    %v2275 = vld [vmem:[%s7 + $0x4] sm:$0xf]
    %v2276 = vld [vmem:[%s7 + $0x8] sm:$0xf]
    %v2277 = vld [vmem:[%s7 + $0xc] sm:$0xf]
    %v2278 = vld [vmem:[%s7 + $0x10] sm:$0xf]
    %v2279 = vld [vmem:[%s7 + $0x14] sm:$0xf]
    %v2280 = vld [vmem:[%s7 + $0x18] sm:$0xf]
    %v2281 = vld [vmem:[%s7 + $0x1c] sm:$0xf]
    %v2282 = vld [vmem:[%s7 + $0x20] sm:$0xf]
    %v2283 = vld [vmem:[%s7 + $0x24] sm:$0xf]
    %v2284 = vld [vmem:[%s7 + $0x28] sm:$0xf]
    %v2285 = vld [vmem:[%s7 + $0x2c] sm:$0xf]
    %v2286 = vld [vmem:[%s7 + $0x30] sm:$0xf]
    %v2287 = vld [vmem:[%s7 + $0x34] sm:$0xf]
    %v2288 = vld [vmem:[%s7 + $0x38] sm:$0xf]
    %v2289 = vld [vmem:[%s7 + $0x3c] sm:$0xf]
    %v2290 = vld [vmem:[%s7 + $0x40] sm:$0xf]
    %v2291 = vld [vmem:[%s7 + $0x44] sm:$0xf]
    %v2292 = vld [vmem:[%s7 + $0x48] sm:$0xf]
    %v2293 = vld [vmem:[%s7 + $0x4c] sm:$0xf]
    %v2294 = vld [vmem:[%s7 + $0x50] sm:$0xf]
    %v2295 = vld [vmem:[%s7 + $0x54] sm:$0xf]
    %v2296 = vld [vmem:[%s7 + $0x58] sm:$0xf]
    %v2297 = vld [vmem:[%s7 + $0x5c] sm:$0xf]
    %v2298 = vld [vmem:[%s7 + $0x60] sm:$0xf]
    %v2299 = vld [vmem:[%s7 + $0x64] sm:$0xf]
    %v2300 = vld [vmem:[%s7 + $0x68] sm:$0xf]
    %v2301 = vld [vmem:[%s7 + $0x6c] sm:$0xf]
    %v2302 = vld [vmem:[%s7 + $0x70] sm:$0xf]
    %v2303 = vld [vmem:[%s7 + $0x74] sm:$0xf]
    %v2304 = vld [vmem:[%s7 + $0x78] sm:$0xf]
    %v2305 = vld [vmem:[%s7 + $0x7c] sm:$0xf]
    %v2306 = vld [vmem:[%s7 + $0x80] sm:$0xf]
    %v2307 = vld [vmem:[%s7 + $0x84] sm:$0xf]
    %v2308 = vld [vmem:[%s7 + $0x88] sm:$0xf]
    %v2309 = vld [vmem:[%s7 + $0x8c] sm:$0xf]
    %v2310 = vld [vmem:[%s7 + $0x90] sm:$0xf]
    %v2311 = vld [vmem:[%s7 + $0x94] sm:$0xf]
    %v2312 = vld [vmem:[%s7 + $0x98] sm:$0xf]
    %v2313 = vld [vmem:[%s7 + $0x9c] sm:$0xf]
    %v2314 = vld [vmem:[%s7 + $0xa0] sm:$0xf]
    %v2315 = vld [vmem:[%s7 + $0xa4] sm:$0xf]
    %v2316 = vld [vmem:[%s7 + $0xa8] sm:$0xf]
    %v2317 = vld [vmem:[%s7 + $0xac] sm:$0xf]
    %v2318 = vld [vmem:[%s7 + $0xb0] sm:$0xf]
    %v2319 = vld [vmem:[%s7 + $0xb4] sm:$0xf]
    %v2320 = vld [vmem:[%s7 + $0xb8] sm:$0xf]
    %v2321 = vld [vmem:[%s7 + $0xbc] sm:$0xf]
    %v2322 = vld [vmem:[%s7 + $0xc0] sm:$0xf]
    %v2323 = vld [vmem:[%s7 + $0xc4] sm:$0xf]
    %v2324 = vld [vmem:[%s7 + $0xc8] sm:$0xf]
    %v2325 = vld [vmem:[%s7 + $0xcc] sm:$0xf]
    %v2326 = vld [vmem:[%s7 + $0xd0] sm:$0xf]
    %v2327 = vld [vmem:[%s7 + $0xd4] sm:$0xf]
    %v2328 = vld [vmem:[%s7 + $0xd8] sm:$0xf]
    %v2329 = vld [vmem:[%s7 + $0xdc] sm:$0xf]
    %v2330 = vld [vmem:[%s7 + $0xe0] sm:$0xf]
    %v2331 = vld [vmem:[%s7 + $0xe4] sm:$0xf]
    %v2332 = vld [vmem:[%s7 + $0xe8] sm:$0xf]
    %v2333 = vld [vmem:[%s7 + $0xec] sm:$0xf]
    %v2334 = vld [vmem:[%s7 + $0xf0] sm:$0xf]
    %v2335 = vld [vmem:[%s7 + $0xf4] sm:$0xf]
    %v2336 = vld [vmem:[%s7 + $0xf8] sm:$0xf]
    %v2337 = vld [vmem:[%s7 + $0xfc] sm:$0xf]
    %v2338 = vld [vmem:[%s8] sm:$0x1]
    %v2340 = vlaneseq
    %v2341 = vshrl.u32 %v2340, 7
    %v2342 = vsub.s32 0, %v2341
    %v2343 = vrot.slane %v2338, %v2342
    %v2409 = vunpack.c.l.b16 %v2274
    %v2410 = vunpack.c.l.b16 %v2275
    %v2411 = vunpack.c.l.b16 %v2276
    %v2412 = vunpack.c.l.b16 %v2277
    %v2413 = vunpack.c.l.b16 %v2278
    %v2414 = vunpack.c.l.b16 %v2279
    %v2415 = vunpack.c.l.b16 %v2280
    %v2416 = vunpack.c.l.b16 %v2281
    %v2417 = vunpack.c.l.b16 %v2282
    %v2418 = vunpack.c.l.b16 %v2283
    %v2419 = vunpack.c.l.b16 %v2284
    %v2420 = vunpack.c.l.b16 %v2285
    %v2421 = vunpack.c.l.b16 %v2286
    %v2422 = vunpack.c.l.b16 %v2287
    %v2423 = vunpack.c.l.b16 %v2288
    %v2424 = vunpack.c.l.b16 %v2289
    %v2425 = vunpack.c.l.b16 %v2290
    %v2426 = vunpack.c.l.b16 %v2291
    %v2427 = vunpack.c.l.b16 %v2292
    %v2428 = vunpack.c.l.b16 %v2293
    %v2429 = vunpack.c.l.b16 %v2294
    %v2430 = vunpack.c.l.b16 %v2295
    %v2431 = vunpack.c.l.b16 %v2296
    %v2432 = vunpack.c.l.b16 %v2297
    %v2433 = vunpack.c.l.b16 %v2298
    %v2434 = vunpack.c.l.b16 %v2299
    %v2435 = vunpack.c.l.b16 %v2300
    %v2436 = vunpack.c.l.b16 %v2301
    %v2437 = vunpack.c.l.b16 %v2302
    %v2438 = vunpack.c.l.b16 %v2303
    %v2439 = vunpack.c.l.b16 %v2304
    %v2440 = vunpack.c.l.b16 %v2305
    %v2441 = vunpack.c.l.b16 %v2306
    %v2442 = vunpack.c.l.b16 %v2307
    %v2443 = vunpack.c.l.b16 %v2308
    %v2444 = vunpack.c.l.b16 %v2309
    %v2445 = vunpack.c.l.b16 %v2310
    %v2446 = vunpack.c.l.b16 %v2311
    %v2447 = vunpack.c.l.b16 %v2312
    %v2448 = vunpack.c.l.b16 %v2313
    %v2449 = vunpack.c.l.b16 %v2314
    %v2450 = vunpack.c.l.b16 %v2315
    %v2451 = vunpack.c.l.b16 %v2316
    %v2452 = vunpack.c.l.b16 %v2317
    %v2453 = vunpack.c.l.b16 %v2318
    %v2454 = vunpack.c.l.b16 %v2319
    %v2455 = vunpack.c.l.b16 %v2320
    %v2456 = vunpack.c.l.b16 %v2321
    %v2457 = vunpack.c.l.b16 %v2322
    %v2458 = vunpack.c.l.b16 %v2323
    %v2459 = vunpack.c.l.b16 %v2324
    %v2460 = vunpack.c.l.b16 %v2325
    %v2461 = vunpack.c.l.b16 %v2326
    %v2462 = vunpack.c.l.b16 %v2327
    %v2463 = vunpack.c.l.b16 %v2328
    %v2464 = vunpack.c.l.b16 %v2329
    %v2465 = vunpack.c.l.b16 %v2330
    %v2466 = vunpack.c.l.b16 %v2331
    %v2467 = vunpack.c.l.b16 %v2332
    %v2468 = vunpack.c.l.b16 %v2333
    %v2469 = vunpack.c.l.b16 %v2334
    %v2470 = vunpack.c.l.b16 %v2335
    %v2471 = vunpack.c.l.b16 %v2336
    %v2472 = vunpack.c.l.b16 %v2337
    %v2473 = vpack.c.b16 %v2410, %v2409
    %v2474 = vpack.c.b16 %v2412, %v2411
    %v2475 = vpack.c.b16 %v2414, %v2413
    %v2476 = vpack.c.b16 %v2416, %v2415
    %v2477 = vpack.c.b16 %v2418, %v2417
    %v2478 = vpack.c.b16 %v2420, %v2419
    %v2479 = vpack.c.b16 %v2422, %v2421
    %v2480 = vpack.c.b16 %v2424, %v2423
    %v2481 = vpack.c.b16 %v2426, %v2425
    %v2482 = vpack.c.b16 %v2428, %v2427
    %v2483 = vpack.c.b16 %v2430, %v2429
    %v2484 = vpack.c.b16 %v2432, %v2431
    %v2485 = vpack.c.b16 %v2434, %v2433
    %v2486 = vpack.c.b16 %v2436, %v2435
    %v2487 = vpack.c.b16 %v2438, %v2437
    %v2488 = vpack.c.b16 %v2440, %v2439
    %v2489 = vpack.c.b16 %v2442, %v2441
    %v2490 = vpack.c.b16 %v2444, %v2443
    %v2491 = vpack.c.b16 %v2446, %v2445
    %v2492 = vpack.c.b16 %v2448, %v2447
    %v2493 = vpack.c.b16 %v2450, %v2449
    %v2494 = vpack.c.b16 %v2452, %v2451
    %v2495 = vpack.c.b16 %v2454, %v2453
    %v2496 = vpack.c.b16 %v2456, %v2455
    %v2497 = vpack.c.b16 %v2458, %v2457
    %v2498 = vpack.c.b16 %v2460, %v2459
    %v2499 = vpack.c.b16 %v2462, %v2461
    %v2500 = vpack.c.b16 %v2464, %v2463
    %v2501 = vpack.c.b16 %v2466, %v2465
    %v2502 = vpack.c.b16 %v2468, %v2467
    %v2503 = vpack.c.b16 %v2470, %v2469
    %v2504 = vpack.c.b16 %v2472, %v2471
    %2537 = vmatprep.subr.bf16.mxu0 0
    %2538 = vmatpush1.bf16.msra.mxu0 %v2480
    %2539 = vmatprep.subr.bf16.mxu0 0
    %2540 = vmatpush1.bf16.msra.mxu0 %v2479
    %2541 = vmatprep.subr.bf16.mxu0 0
    %2542 = vmatpush1.bf16.msra.mxu0 %v2478
    %2543 = vmatprep.subr.bf16.mxu0 0
    %2544 = vmatpush1.bf16.msra.mxu0 %v2477
    %2545 = vmatprep.subr.bf16.mxu0 0
    %2546 = vmatpush1.bf16.msra.mxu0 %v2476
    %2547 = vmatprep.subr.bf16.mxu0 0
    %2548 = vmatpush1.bf16.msra.mxu0 %v2475
    %2549 = vmatprep.subr.bf16.mxu0 0
    %2550 = vmatpush1.bf16.msra.mxu0 %v2474
    %2551 = vmatprep.subr.bf16.mxu0 0
    %2552 = vmatpush1.bf16.msra.mxu0 %v2473
    %2553 = vmatprep.subr.bf16.mxu0 0
    %2554 = vmatpush2.bf16.msra.mxu0 %v2488
    %2555 = vmatprep.subr.bf16.mxu0 0
    %2556 = vmatpush2.bf16.msra.mxu0 %v2487
    %2557 = vmatprep.subr.bf16.mxu0 0
    %2558 = vmatpush2.bf16.msra.mxu0 %v2486
    %2559 = vmatprep.subr.bf16.mxu0 0
    %2560 = vmatpush2.bf16.msra.mxu0 %v2485
    %2561 = vmatprep.subr.bf16.mxu0 0
    %2562 = vmatpush2.bf16.msra.mxu0 %v2484
    %2563 = vmatprep.subr.bf16.mxu0 0
    %2564 = vmatpush2.bf16.msra.mxu0 %v2483
    %2565 = vmatprep.subr.bf16.mxu0 0
    %2566 = vmatpush2.bf16.msra.mxu0 %v2482
    %2567 = vmatprep.subr.bf16.mxu0 0
    %2568 = vmatpush2.bf16.msra.mxu0 %v2481
    %2569 = vmatprep.mubr.bf16.mxu0 %v2271
    %2570 = vmatmul.mubr.bf16.gmra.mxu0 %v2270
    %v2571 = vpop.f32.mrf.mxu0
    %v2572 = vadd.f32 %v2343, %v2571
    %v2573 = vpop.f32.mrf.mxu0
    %v2574 = vpop.f32.mrf.mxu0
    %v2575 = vpop.f32.mrf.mxu0
    %2576 = vdwg.mxu0
    %2577 = vmatprep.subr.bf16.mxu0 0
    %2578 = vmatpush1.bf16.msra.mxu0 %v2496
    %2579 = vmatprep.subr.bf16.mxu0 0
    %2580 = vmatpush1.bf16.msra.mxu0 %v2495
    %2581 = vmatprep.subr.bf16.mxu0 0
    %2582 = vmatpush1.bf16.msra.mxu0 %v2494
    %2583 = vmatprep.subr.bf16.mxu0 0
    %2584 = vmatpush1.bf16.msra.mxu0 %v2493
    %2585 = vmatprep.subr.bf16.mxu0 0
    %2586 = vmatpush1.bf16.msra.mxu0 %v2492
    %2587 = vmatprep.subr.bf16.mxu0 0
    %2588 = vmatpush1.bf16.msra.mxu0 %v2491
    %2589 = vmatprep.subr.bf16.mxu0 0
    %2590 = vmatpush1.bf16.msra.mxu0 %v2490
    %2591 = vmatprep.subr.bf16.mxu0 0
    %2592 = vmatpush1.bf16.msra.mxu0 %v2489
    %2593 = vmatprep.subr.bf16.mxu0 0
    %2594 = vmatpush2.bf16.msra.mxu0 %v2504
    %2595 = vmatprep.subr.bf16.mxu0 0
    %2596 = vmatpush2.bf16.msra.mxu0 %v2503
    %2597 = vmatprep.subr.bf16.mxu0 0
    %2598 = vmatpush2.bf16.msra.mxu0 %v2502
    %2599 = vmatprep.subr.bf16.mxu0 0
    %2600 = vmatpush2.bf16.msra.mxu0 %v2501
    %2601 = vmatprep.subr.bf16.mxu0 0
    %2602 = vmatpush2.bf16.msra.mxu0 %v2500
    %2603 = vmatprep.subr.bf16.mxu0 0
    %2604 = vmatpush2.bf16.msra.mxu0 %v2499
    %2605 = vmatprep.subr.bf16.mxu0 0
    %2606 = vmatpush2.bf16.msra.mxu0 %v2498
    %2607 = vmatprep.subr.bf16.mxu0 0
    %2608 = vmatpush2.bf16.msra.mxu0 %v2497
    %2609 = vmatprep.mubr.bf16.mxu0 %v2273
    %2610 = vmatmul.mubr.bf16.gmra.mxu0 %v2272
    %v2611 = vpop.f32.mrf.mxu0
    %v2612 = vadd.f32 %v2572, %v2611
    %v2613 = vpop.f32.mrf.mxu0
    %v2614 = vpop.f32.mrf.mxu0
    %v2615 = vpop.f32.mrf.mxu0
    %2616 = vdwg.mxu0
    %2617 = vst [vmem:[%s9] sm:$0xff] %v2612
  $region45: #{model_forward.1} parent=0 // pred_fallthru
    _
  // Predicated region
  $region46: #{model_forward.1} parent=0 // pred_check
    _
  $region47: #{model_forward.1} parent=0 // pred_check_branch
    %2619 = sbr.rel (0) target = $region49
  $region48: #{model_forward.1} parent=0 // pred_region
    _
  $region49: #{model_forward.1} parent=0 // pred_fallthru
    _
  // Predicated region
  $region50: #{model_forward.1} parent=0 // pred_check
    _
  $region51: #{model_forward.1} parent=0 // pred_check_branch
    %2621 = sbr.rel (0) target = $region53
  $region52: #{model_forward.1} parent=0 // pred_region
    _
  $region53: #{model_forward.1} parent=0 // pred_fallthru
    _

</llo_original>
